<compile_context>
chip_gen: v7x
topology: tpu7x:2x2x1
jax: 0.10.0
libtpu: 0.0.40
codegen_flags: <defaults>
</compile_context>

<pallas_src>
import jax
import jax.numpy as jnp
from jax.experimental import pallas as pl
from jax.experimental.pallas import tpu as pltpu

K = 7        # conv kernel size
PAD = 3      # conv padding
LANES = 128  # TPU vreg lane width


def _tree_sum(vals):
    """Balanced-tree sum to keep the f32 add dependency chain short."""
    vals = list(vals)
    while len(vals) > 1:
        nxt = [vals[i] + vals[i + 1] for i in range(0, len(vals) - 1, 2)]
        if len(vals) % 2:
            nxt.append(vals[-1])
        vals = nxt
    return vals[0]


def _make_kernel(NB, H, Wt):
    def kernel(x_ref, w_ref, b_ref, o_ref):
        # x_ref: (NB, C, Hp_pad, Wt)  zero-padded, lane-packed input slabs (VMEM)
        # w_ref: (2*K*K,) f32 SMEM (avg-half pre-scaled by 1/C); b_ref: (1,) SMEM
        # o_ref: (NB, H, Wt)
        w = [w_ref[i] for i in range(2 * K * K)]   # hoist scalar weight reads
        bias = b_ref[0]

        for gb in range(NB):
            x = x_ref[gb].astype(jnp.float32)      # (C, Hp_pad, Wt)
            # Channel descriptors.  The 1/C scale lives in the weights, so a
            # plain channel-sum suffices; all-zero padding regions stay zero,
            # reproducing the conv's zero padding exactly.
            ssum = jnp.sum(x, axis=0)              # (Hp_pad, Wt)
            mx = jnp.max(x, axis=0)                # (Hp_pad, Wt)

            partials = []
            for c, plane in enumerate((ssum, mx)):
                for ki in range(K):
                    # Row offset of the tap: static sublane slice starting at ki.
                    row = plane[ki:ki + H, :]      # (H, Wt)
                    base = (c * K + ki) * K
                    part = w[base] * row
                    for kj in range(1, K):
                        # Column offset via XLU lane rotate: rolling by (Wt-kj)
                        # brings column (j + kj) to column j (== roll by -kj).
                        # Valid output lanes never cross a slot boundary because
                        # each packed element carries its own 3-lane zero pad.
                        shifted = pltpu.roll(row, Wt - kj, axis=1)
                        part = part + w[base + kj] * shifted
                    partials.append(part)

            acc = _tree_sum(partials) + bias
            o_ref[gb] = jax.nn.sigmoid(acc).astype(o_ref.dtype)

    return kernel


def spatial_attention(x, conv_w, conv_b):
    """x: (N, C, H, W); conv_w: (1, 2, 7, 7); conv_b: (1,). Returns (N, 1, H, W)."""
    N, C, H, W = x.shape
    Hp = H + 2 * PAD
    Wp = W + 2 * PAD
    Hp_pad = -(-Hp // 8) * 8                    # sublane-pad to a multiple of 8
    P = max(1, LANES // Wp)                     # batch elements packed per slab
    Wt = -(-(P * Wp) // LANES) * LANES          # slab lane width (multiple of 128)

    G = -(-N // P)                              # number of slabs
    slab_bytes = C * Hp_pad * Wt * x.dtype.itemsize
    # Slabs per grid step: amortize per-step overhead (want NB large), keep at
    # least 2 grid steps for megacore/pipelining, bound the input block to
    # ~4 MiB, and among nearby candidates pick the one with least pad waste.
    nb_max = max(1, min(8, G // 2, (4 << 20) // max(slab_bytes, 1)))
    candidates = range(max(1, nb_max - 3), nb_max + 1)
    NB = max(candidates, key=lambda nb: (-(-(-G // nb) * nb), nb))
    G_pad = -(-G // NB) * NB
    grid = G_pad // NB

    # ---- pack: (N, C, H, W) -> (G_pad, C, Hp_pad, Wt), zero-padded ----------
    xp = jnp.pad(x, ((0, G_pad * P - N), (0, 0),
                     (PAD, Hp_pad - H - PAD), (PAD, PAD)))
    xp = xp.reshape(G_pad, P, C, Hp_pad, Wp)
    xp = xp.transpose(0, 2, 3, 1, 4).reshape(G_pad, C, Hp_pad, P * Wp)
    xp = jnp.pad(xp, ((0, 0), (0, 0), (0, 0), (0, Wt - P * Wp)))

    # Fold the 1/C mean scale into the avg-channel weights (channel 0).
    scale = jnp.array([1.0 / C, 1.0], jnp.float32).reshape(1, 2, 1, 1)
    w_flat = (conv_w.astype(jnp.float32) * scale).reshape(-1)   # (2*K*K,) -> SMEM
    b = conv_b.reshape(-1).astype(jnp.float32)                  # (1,)     -> SMEM

    in_block = NB * C * Hp_pad * Wt * xp.dtype.itemsize
    out_block = NB * H * Wt * x.dtype.itemsize
    vmem_limit = int(min(max(2 * (in_block + out_block) + (4 << 20), 16 << 20),
                         64 << 20))

    cost = pl.CostEstimate(
        flops=int(G_pad) * (C * Hp_pad * Wt * 2 + H * Wt * 2 * 2 * K * K),
        transcendentals=int(G_pad) * H * Wt,
        bytes_accessed=int(xp.size * xp.dtype.itemsize
                           + G_pad * H * Wt * x.dtype.itemsize
                           + 4 * (2 * K * K + 1)))

    out = pl.pallas_call(
        _make_kernel(NB, H, Wt),
        out_shape=jax.ShapeDtypeStruct((G_pad, H, Wt), x.dtype),
        grid=(grid,),
        in_specs=[
            pl.BlockSpec((NB, C, Hp_pad, Wt), lambda g: (g, 0, 0, 0)),
            pl.BlockSpec(memory_space=pltpu.MemorySpace.SMEM),
            pl.BlockSpec(memory_space=pltpu.MemorySpace.SMEM),
        ],
        out_specs=pl.BlockSpec((NB, H, Wt), lambda g: (g, 0, 0)),
        compiler_params=pltpu.CompilerParams(
            dimension_semantics=("parallel",),
            vmem_limit_bytes=vmem_limit),
        cost_estimate=cost,
    )(xp, w_flat, b)

    # ---- unpack: (G_pad, H, Wt) -> (N, 1, H, W) ------------------------------
    out = out[:, :, :P * Wp].reshape(G_pad, H, P, Wp)[:, :, :, :W]
    out = out.transpose(0, 2, 1, 3).reshape(G_pad * P, H, W)[:N]
    return out.reshape(N, 1, H, W)


def spatial_attention_ref(x, conv_w, conv_b):
    """Pure-JAX reference matching the PyTorch module."""
    avg = jnp.mean(x, axis=1, keepdims=True)
    mx = jnp.max(x, axis=1, keepdims=True)
    feat = jnp.concatenate([avg, mx], axis=1)
    out = jax.lax.conv_general_dilated(
        feat, conv_w, window_strides=(1, 1), padding=((PAD, PAD), (PAD, PAD)),
        dimension_numbers=("NCHW", "OIHW", "NCHW"),
        precision=jax.lax.Precision.HIGHEST)
    out = out + conv_b.reshape(1, 1, 1, 1)
    return jax.nn.sigmoid(out)


if __name__ == "__main__":
    key = jax.random.PRNGKey(0)
    k_x, k_w, k_b = jax.random.split(key, 3)

    N, C, H, W = 2, 4, 16, 16
    x = jax.random.normal(k_x, (N, C, H, W), dtype=jnp.float32)

    # Deterministic synthetic Conv2d(2, 1, kernel_size=7, padding=3) params
    # (PyTorch default init is U(-bound, bound) with bound = 1/sqrt(fan_in)).
    fan_in = 2 * K * K
    bound = 1.0 / (fan_in ** 0.5)
    conv_w = jax.random.uniform(k_w, (1, 2, K, K), jnp.float32, -bound, bound)
    conv_b = jax.random.uniform(k_b, (1,), jnp.float32, -bound, bound)

    sa = jax.jit(spatial_attention)
    out = jax.block_until_ready(sa(x, conv_w, conv_b))
    ref = jax.block_until_ready(spatial_attention_ref(x, conv_w, conv_b))

    assert out.shape == (N, 1, H, W), out.shape
    assert jnp.allclose(out, ref, atol=2e-5, rtol=1e-5), float(jnp.max(jnp.abs(out - ref)))
    print("KERNEL_OK")
</pallas_src>

<mosaic_0001>
module attributes {stable_mosaic.version = 11 : i64} {
  func.func @kernel(%arg0: i32, %arg1: memref<1x4x24x128xf32, #tpu.memory_space<vmem>>, %arg2: memref<98xf32, #tpu.memory_space<smem>>, %arg3: memref<1xf32, #tpu.memory_space<smem>>, %arg4: memref<1x16x128xf32, #tpu.memory_space<vmem>>) attributes {dimension_semantics = [#tpu.dimension_semantics<parallel>], iteration_bounds = array<i64: 1>, scalar_prefetch = 0 : i64, scratch_operands = 0 : i64, tpu.core_type = #tpu.core_type<tc>, window_params = [{transform_indices = @transform_0, window_bounds = array<i64: 1, 4, 24, 128>}, {transform_indices = @transform_1, window_bounds = array<i64: 98>}, {transform_indices = @transform_2, window_bounds = array<i64: 1>}, {transform_indices = @transform_3, window_bounds = array<i64: 1, 16, 128>}]} {
    %c0 = arith.constant 0 : index
    %0 = memref.load %arg2[%c0] : memref<98xf32, #tpu.memory_space<smem>>
    %c1 = arith.constant 1 : index
    %1 = memref.load %arg2[%c1] : memref<98xf32, #tpu.memory_space<smem>>
    %c2 = arith.constant 2 : index
    %2 = memref.load %arg2[%c2] : memref<98xf32, #tpu.memory_space<smem>>
    %c3 = arith.constant 3 : index
    %3 = memref.load %arg2[%c3] : memref<98xf32, #tpu.memory_space<smem>>
    %c4 = arith.constant 4 : index
    %4 = memref.load %arg2[%c4] : memref<98xf32, #tpu.memory_space<smem>>
    %c5 = arith.constant 5 : index
    %5 = memref.load %arg2[%c5] : memref<98xf32, #tpu.memory_space<smem>>
    %c6 = arith.constant 6 : index
    %6 = memref.load %arg2[%c6] : memref<98xf32, #tpu.memory_space<smem>>
    %c7 = arith.constant 7 : index
    %7 = memref.load %arg2[%c7] : memref<98xf32, #tpu.memory_space<smem>>
    %c8 = arith.constant 8 : index
    %8 = memref.load %arg2[%c8] : memref<98xf32, #tpu.memory_space<smem>>
    %c9 = arith.constant 9 : index
    %9 = memref.load %arg2[%c9] : memref<98xf32, #tpu.memory_space<smem>>
    %c10 = arith.constant 10 : index
    %10 = memref.load %arg2[%c10] : memref<98xf32, #tpu.memory_space<smem>>
    %c11 = arith.constant 11 : index
    %11 = memref.load %arg2[%c11] : memref<98xf32, #tpu.memory_space<smem>>
    %c12 = arith.constant 12 : index
    %12 = memref.load %arg2[%c12] : memref<98xf32, #tpu.memory_space<smem>>
    %c13 = arith.constant 13 : index
    %13 = memref.load %arg2[%c13] : memref<98xf32, #tpu.memory_space<smem>>
    %c14 = arith.constant 14 : index
    %14 = memref.load %arg2[%c14] : memref<98xf32, #tpu.memory_space<smem>>
    %c15 = arith.constant 15 : index
    %15 = memref.load %arg2[%c15] : memref<98xf32, #tpu.memory_space<smem>>
    %c16 = arith.constant 16 : index
    %16 = memref.load %arg2[%c16] : memref<98xf32, #tpu.memory_space<smem>>
    %c17 = arith.constant 17 : index
    %17 = memref.load %arg2[%c17] : memref<98xf32, #tpu.memory_space<smem>>
    %c18 = arith.constant 18 : index
    %18 = memref.load %arg2[%c18] : memref<98xf32, #tpu.memory_space<smem>>
    %c19 = arith.constant 19 : index
    %19 = memref.load %arg2[%c19] : memref<98xf32, #tpu.memory_space<smem>>
    %c20 = arith.constant 20 : index
    %20 = memref.load %arg2[%c20] : memref<98xf32, #tpu.memory_space<smem>>
    %c21 = arith.constant 21 : index
    %21 = memref.load %arg2[%c21] : memref<98xf32, #tpu.memory_space<smem>>
    %c22 = arith.constant 22 : index
    %22 = memref.load %arg2[%c22] : memref<98xf32, #tpu.memory_space<smem>>
    %c23 = arith.constant 23 : index
    %23 = memref.load %arg2[%c23] : memref<98xf32, #tpu.memory_space<smem>>
    %c24 = arith.constant 24 : index
    %24 = memref.load %arg2[%c24] : memref<98xf32, #tpu.memory_space<smem>>
    %c25 = arith.constant 25 : index
    %25 = memref.load %arg2[%c25] : memref<98xf32, #tpu.memory_space<smem>>
    %c26 = arith.constant 26 : index
    %26 = memref.load %arg2[%c26] : memref<98xf32, #tpu.memory_space<smem>>
    %c27 = arith.constant 27 : index
    %27 = memref.load %arg2[%c27] : memref<98xf32, #tpu.memory_space<smem>>
    %c28 = arith.constant 28 : index
    %28 = memref.load %arg2[%c28] : memref<98xf32, #tpu.memory_space<smem>>
    %c29 = arith.constant 29 : index
    %29 = memref.load %arg2[%c29] : memref<98xf32, #tpu.memory_space<smem>>
    %c30 = arith.constant 30 : index
    %30 = memref.load %arg2[%c30] : memref<98xf32, #tpu.memory_space<smem>>
    %c31 = arith.constant 31 : index
    %31 = memref.load %arg2[%c31] : memref<98xf32, #tpu.memory_space<smem>>
    %c32 = arith.constant 32 : index
    %32 = memref.load %arg2[%c32] : memref<98xf32, #tpu.memory_space<smem>>
    %c33 = arith.constant 33 : index
    %33 = memref.load %arg2[%c33] : memref<98xf32, #tpu.memory_space<smem>>
    %c34 = arith.constant 34 : index
    %34 = memref.load %arg2[%c34] : memref<98xf32, #tpu.memory_space<smem>>
    %c35 = arith.constant 35 : index
    %35 = memref.load %arg2[%c35] : memref<98xf32, #tpu.memory_space<smem>>
    %c36 = arith.constant 36 : index
    %36 = memref.load %arg2[%c36] : memref<98xf32, #tpu.memory_space<smem>>
    %c37 = arith.constant 37 : index
    %37 = memref.load %arg2[%c37] : memref<98xf32, #tpu.memory_space<smem>>
    %c38 = arith.constant 38 : index
    %38 = memref.load %arg2[%c38] : memref<98xf32, #tpu.memory_space<smem>>
    %c39 = arith.constant 39 : index
    %39 = memref.load %arg2[%c39] : memref<98xf32, #tpu.memory_space<smem>>
    %c40 = arith.constant 40 : index
    %40 = memref.load %arg2[%c40] : memref<98xf32, #tpu.memory_space<smem>>
    %c41 = arith.constant 41 : index
    %41 = memref.load %arg2[%c41] : memref<98xf32, #tpu.memory_space<smem>>
    %c42 = arith.constant 42 : index
    %42 = memref.load %arg2[%c42] : memref<98xf32, #tpu.memory_space<smem>>
    %c43 = arith.constant 43 : index
    %43 = memref.load %arg2[%c43] : memref<98xf32, #tpu.memory_space<smem>>
    %c44 = arith.constant 44 : index
    %44 = memref.load %arg2[%c44] : memref<98xf32, #tpu.memory_space<smem>>
    %c45 = arith.constant 45 : index
    %45 = memref.load %arg2[%c45] : memref<98xf32, #tpu.memory_space<smem>>
    %c46 = arith.constant 46 : index
    %46 = memref.load %arg2[%c46] : memref<98xf32, #tpu.memory_space<smem>>
    %c47 = arith.constant 47 : index
    %47 = memref.load %arg2[%c47] : memref<98xf32, #tpu.memory_space<smem>>
    %c48 = arith.constant 48 : index
    %48 = memref.load %arg2[%c48] : memref<98xf32, #tpu.memory_space<smem>>
    %c49 = arith.constant 49 : index
    %49 = memref.load %arg2[%c49] : memref<98xf32, #tpu.memory_space<smem>>
    %c50 = arith.constant 50 : index
    %50 = memref.load %arg2[%c50] : memref<98xf32, #tpu.memory_space<smem>>
    %c51 = arith.constant 51 : index
    %51 = memref.load %arg2[%c51] : memref<98xf32, #tpu.memory_space<smem>>
    %c52 = arith.constant 52 : index
    %52 = memref.load %arg2[%c52] : memref<98xf32, #tpu.memory_space<smem>>
    %c53 = arith.constant 53 : index
    %53 = memref.load %arg2[%c53] : memref<98xf32, #tpu.memory_space<smem>>
    %c54 = arith.constant 54 : index
    %54 = memref.load %arg2[%c54] : memref<98xf32, #tpu.memory_space<smem>>
    %c55 = arith.constant 55 : index
    %55 = memref.load %arg2[%c55] : memref<98xf32, #tpu.memory_space<smem>>
    %c56 = arith.constant 56 : index
    %56 = memref.load %arg2[%c56] : memref<98xf32, #tpu.memory_space<smem>>
    %c57 = arith.constant 57 : index
    %57 = memref.load %arg2[%c57] : memref<98xf32, #tpu.memory_space<smem>>
    %c58 = arith.constant 58 : index
    %58 = memref.load %arg2[%c58] : memref<98xf32, #tpu.memory_space<smem>>
    %c59 = arith.constant 59 : index
    %59 = memref.load %arg2[%c59] : memref<98xf32, #tpu.memory_space<smem>>
    %c60 = arith.constant 60 : index
    %60 = memref.load %arg2[%c60] : memref<98xf32, #tpu.memory_space<smem>>
    %c61 = arith.constant 61 : index
    %61 = memref.load %arg2[%c61] : memref<98xf32, #tpu.memory_space<smem>>
    %c62 = arith.constant 62 : index
    %62 = memref.load %arg2[%c62] : memref<98xf32, #tpu.memory_space<smem>>
    %c63 = arith.constant 63 : index
    %63 = memref.load %arg2[%c63] : memref<98xf32, #tpu.memory_space<smem>>
    %c64 = arith.constant 64 : index
    %64 = memref.load %arg2[%c64] : memref<98xf32, #tpu.memory_space<smem>>
    %c65 = arith.constant 65 : index
    %65 = memref.load %arg2[%c65] : memref<98xf32, #tpu.memory_space<smem>>
    %c66 = arith.constant 66 : index
    %66 = memref.load %arg2[%c66] : memref<98xf32, #tpu.memory_space<smem>>
    %c67 = arith.constant 67 : index
    %67 = memref.load %arg2[%c67] : memref<98xf32, #tpu.memory_space<smem>>
    %c68 = arith.constant 68 : index
    %68 = memref.load %arg2[%c68] : memref<98xf32, #tpu.memory_space<smem>>
    %c69 = arith.constant 69 : index
    %69 = memref.load %arg2[%c69] : memref<98xf32, #tpu.memory_space<smem>>
    %c70 = arith.constant 70 : index
    %70 = memref.load %arg2[%c70] : memref<98xf32, #tpu.memory_space<smem>>
    %c71 = arith.constant 71 : index
    %71 = memref.load %arg2[%c71] : memref<98xf32, #tpu.memory_space<smem>>
    %c72 = arith.constant 72 : index
    %72 = memref.load %arg2[%c72] : memref<98xf32, #tpu.memory_space<smem>>
    %c73 = arith.constant 73 : index
    %73 = memref.load %arg2[%c73] : memref<98xf32, #tpu.memory_space<smem>>
    %c74 = arith.constant 74 : index
    %74 = memref.load %arg2[%c74] : memref<98xf32, #tpu.memory_space<smem>>
    %c75 = arith.constant 75 : index
    %75 = memref.load %arg2[%c75] : memref<98xf32, #tpu.memory_space<smem>>
    %c76 = arith.constant 76 : index
    %76 = memref.load %arg2[%c76] : memref<98xf32, #tpu.memory_space<smem>>
    %c77 = arith.constant 77 : index
    %77 = memref.load %arg2[%c77] : memref<98xf32, #tpu.memory_space<smem>>
    %c78 = arith.constant 78 : index
    %78 = memref.load %arg2[%c78] : memref<98xf32, #tpu.memory_space<smem>>
    %c79 = arith.constant 79 : index
    %79 = memref.load %arg2[%c79] : memref<98xf32, #tpu.memory_space<smem>>
    %c80 = arith.constant 80 : index
    %80 = memref.load %arg2[%c80] : memref<98xf32, #tpu.memory_space<smem>>
    %c81 = arith.constant 81 : index
    %81 = memref.load %arg2[%c81] : memref<98xf32, #tpu.memory_space<smem>>
    %c82 = arith.constant 82 : index
    %82 = memref.load %arg2[%c82] : memref<98xf32, #tpu.memory_space<smem>>
    %c83 = arith.constant 83 : index
    %83 = memref.load %arg2[%c83] : memref<98xf32, #tpu.memory_space<smem>>
    %c84 = arith.constant 84 : index
    %84 = memref.load %arg2[%c84] : memref<98xf32, #tpu.memory_space<smem>>
    %c85 = arith.constant 85 : index
    %85 = memref.load %arg2[%c85] : memref<98xf32, #tpu.memory_space<smem>>
    %c86 = arith.constant 86 : index
    %86 = memref.load %arg2[%c86] : memref<98xf32, #tpu.memory_space<smem>>
    %c87 = arith.constant 87 : index
    %87 = memref.load %arg2[%c87] : memref<98xf32, #tpu.memory_space<smem>>
    %c88 = arith.constant 88 : index
    %88 = memref.load %arg2[%c88] : memref<98xf32, #tpu.memory_space<smem>>
    %c89 = arith.constant 89 : index
    %89 = memref.load %arg2[%c89] : memref<98xf32, #tpu.memory_space<smem>>
    %c90 = arith.constant 90 : index
    %90 = memref.load %arg2[%c90] : memref<98xf32, #tpu.memory_space<smem>>
    %c91 = arith.constant 91 : index
    %91 = memref.load %arg2[%c91] : memref<98xf32, #tpu.memory_space<smem>>
    %c92 = arith.constant 92 : index
    %92 = memref.load %arg2[%c92] : memref<98xf32, #tpu.memory_space<smem>>
    %c93 = arith.constant 93 : index
    %93 = memref.load %arg2[%c93] : memref<98xf32, #tpu.memory_space<smem>>
    %c94 = arith.constant 94 : index
    %94 = memref.load %arg2[%c94] : memref<98xf32, #tpu.memory_space<smem>>
    %c95 = arith.constant 95 : index
    %95 = memref.load %arg2[%c95] : memref<98xf32, #tpu.memory_space<smem>>
    %c96 = arith.constant 96 : index
    %96 = memref.load %arg2[%c96] : memref<98xf32, #tpu.memory_space<smem>>
    %c97 = arith.constant 97 : index
    %97 = memref.load %arg2[%c97] : memref<98xf32, #tpu.memory_space<smem>>
    %c0_0 = arith.constant 0 : index
    %98 = memref.load %arg3[%c0_0] : memref<1xf32, #tpu.memory_space<smem>>
    %c0_1 = arith.constant 0 : index
    %c0_2 = arith.constant 0 : index
    %c0_3 = arith.constant 0 : index
    %c0_4 = arith.constant 0 : index
    %99 = vector.load %arg1[%c0_1, %c0_2, %c0_3, %c0_4] : memref<1x4x24x128xf32, #tpu.memory_space<vmem>>, vector<1x4x24x128xf32>
    %100 = vector.shape_cast %99 : vector<1x4x24x128xf32> to vector<4x24x128xf32>
    %cst = arith.constant dense<0.000000e+00> : vector<24x128xf32>
    %101 = vector.multi_reduction <add>, %100, %cst [0] : vector<4x24x128xf32> to vector<24x128xf32>
    %cst_5 = arith.constant dense<0xFF800000> : vector<24x128xf32>
    %102 = vector.multi_reduction <maximumf>, %100, %cst_5 [0] : vector<4x24x128xf32> to vector<24x128xf32>
    %103 = vector.extract_strided_slice %101 {offsets = [0, 0], sizes = [16, 128], strides = [1, 1]} : vector<24x128xf32> to vector<16x128xf32>
    %104 = vector.broadcast %0 : f32 to vector<16x128xf32>
    %105 = arith.mulf %104, %103 : vector<16x128xf32>
    %c127_i32 = arith.constant 127 : i32
    %106 = tpu.dynamic_rotate %103 by %c127_i32 dim 1 : vector<16x128xf32>, i32 -> vector<16x128xf32>
    %107 = vector.broadcast %1 : f32 to vector<16x128xf32>
    %108 = arith.mulf %107, %106 : vector<16x128xf32>
    %109 = arith.addf %105, %108 : vector<16x128xf32>
    %c126_i32 = arith.constant 126 : i32
    %110 = tpu.dynamic_rotate %103 by %c126_i32 dim 1 : vector<16x128xf32>, i32 -> vector<16x128xf32>
    %111 = vector.broadcast %2 : f32 to vector<16x128xf32>
    %112 = arith.mulf %111, %110 : vector<16x128xf32>
    %113 = arith.addf %109, %112 : vector<16x128xf32>
    %c125_i32 = arith.constant 125 : i32
    %114 = tpu.dynamic_rotate %103 by %c125_i32 dim 1 : vector<16x128xf32>, i32 -> vector<16x128xf32>
    %115 = vector.broadcast %3 : f32 to vector<16x128xf32>
    %116 = arith.mulf %115, %114 : vector<16x128xf32>
    %117 = arith.addf %113, %116 : vector<16x128xf32>
    %c124_i32 = arith.constant 124 : i32
    %118 = tpu.dynamic_rotate %103 by %c124_i32 dim 1 : vector<16x128xf32>, i32 -> vector<16x128xf32>
    %119 = vector.broadcast %4 : f32 to vector<16x128xf32>
    %120 = arith.mulf %119, %118 : vector<16x128xf32>
    %121 = arith.addf %117, %120 : vector<16x128xf32>
    %c123_i32 = arith.constant 123 : i32
    %122 = tpu.dynamic_rotate %103 by %c123_i32 dim 1 : vector<16x128xf32>, i32 -> vector<16x128xf32>
    %123 = vector.broadcast %5 : f32 to vector<16x128xf32>
    %124 = arith.mulf %123, %122 : vector<16x128xf32>
    %125 = arith.addf %121, %124 : vector<16x128xf32>
    %c122_i32 = arith.constant 122 : i32
    %126 = tpu.dynamic_rotate %103 by %c122_i32 dim 1 : vector<16x128xf32>, i32 -> vector<16x128xf32>
    %127 = vector.broadcast %6 : f32 to vector<16x128xf32>
    %128 = arith.mulf %127, %126 : vector<16x128xf32>
    %129 = arith.addf %125, %128 : vector<16x128xf32>
    %130 = vector.extract_strided_slice %101 {offsets = [1, 0], sizes = [16, 128], strides = [1, 1]} : vector<24x128xf32> to vector<16x128xf32>
    %131 = vector.broadcast %7 : f32 to vector<16x128xf32>
    %132 = arith.mulf %131, %130 : vector<16x128xf32>
    %c127_i32_6 = arith.constant 127 : i32
    %133 = tpu.dynamic_rotate %130 by %c127_i32_6 dim 1 : vector<16x128xf32>, i32 -> vector<16x128xf32>
    %134 = vector.broadcast %8 : f32 to vector<16x128xf32>
    %135 = arith.mulf %134, %133 : vector<16x128xf32>
    %136 = arith.addf %132, %135 : vector<16x128xf32>
    %c126_i32_7 = arith.constant 126 : i32
    %137 = tpu.dynamic_rotate %130 by %c126_i32_7 dim 1 : vector<16x128xf32>, i32 -> vector<16x128xf32>
    %138 = vector.broadcast %9 : f32 to vector<16x128xf32>
    %139 = arith.mulf %138, %137 : vector<16x128xf32>
    %140 = arith.addf %136, %139 : vector<16x128xf32>
    %c125_i32_8 = arith.constant 125 : i32
    %141 = tpu.dynamic_rotate %130 by %c125_i32_8 dim 1 : vector<16x128xf32>, i32 -> vector<16x128xf32>
    %142 = vector.broadcast %10 : f32 to vector<16x128xf32>
    %143 = arith.mulf %142, %141 : vector<16x128xf32>
    %144 = arith.addf %140, %143 : vector<16x128xf32>
    %c124_i32_9 = arith.constant 124 : i32
    %145 = tpu.dynamic_rotate %130 by %c124_i32_9 dim 1 : vector<16x128xf32>, i32 -> vector<16x128xf32>
    %146 = vector.broadcast %11 : f32 to vector<16x128xf32>
    %147 = arith.mulf %146, %145 : vector<16x128xf32>
    %148 = arith.addf %144, %147 : vector<16x128xf32>
    %c123_i32_10 = arith.constant 123 : i32
    %149 = tpu.dynamic_rotate %130 by %c123_i32_10 dim 1 : vector<16x128xf32>, i32 -> vector<16x128xf32>
    %150 = vector.broadcast %12 : f32 to vector<16x128xf32>
    %151 = arith.mulf %150, %149 : vector<16x128xf32>
    %152 = arith.addf %148, %151 : vector<16x128xf32>
    %c122_i32_11 = arith.constant 122 : i32
    %153 = tpu.dynamic_rotate %130 by %c122_i32_11 dim 1 : vector<16x128xf32>, i32 -> vector<16x128xf32>
    %154 = vector.broadcast %13 : f32 to vector<16x128xf32>
    %155 = arith.mulf %154, %153 : vector<16x128xf32>
    %156 = arith.addf %152, %155 : vector<16x128xf32>
    %157 = vector.extract_strided_slice %101 {offsets = [2, 0], sizes = [16, 128], strides = [1, 1]} : vector<24x128xf32> to vector<16x128xf32>
    %158 = vector.broadcast %14 : f32 to vector<16x128xf32>
    %159 = arith.mulf %158, %157 : vector<16x128xf32>
    %c127_i32_12 = arith.constant 127 : i32
    %160 = tpu.dynamic_rotate %157 by %c127_i32_12 dim 1 : vector<16x128xf32>, i32 -> vector<16x128xf32>
    %161 = vector.broadcast %15 : f32 to vector<16x128xf32>
    %162 = arith.mulf %161, %160 : vector<16x128xf32>
    %163 = arith.addf %159, %162 : vector<16x128xf32>
    %c126_i32_13 = arith.constant 126 : i32
    %164 = tpu.dynamic_rotate %157 by %c126_i32_13 dim 1 : vector<16x128xf32>, i32 -> vector<16x128xf32>
    %165 = vector.broadcast %16 : f32 to vector<16x128xf32>
    %166 = arith.mulf %165, %164 : vector<16x128xf32>
    %167 = arith.addf %163, %166 : vector<16x128xf32>
    %c125_i32_14 = arith.constant 125 : i32
    %168 = tpu.dynamic_rotate %157 by %c125_i32_14 dim 1 : vector<16x128xf32>, i32 -> vector<16x128xf32>
    %169 = vector.broadcast %17 : f32 to vector<16x128xf32>
    %170 = arith.mulf %169, %168 : vector<16x128xf32>
    %171 = arith.addf %167, %170 : vector<16x128xf32>
    %c124_i32_15 = arith.constant 124 : i32
    %172 = tpu.dynamic_rotate %157 by %c124_i32_15 dim 1 : vector<16x128xf32>, i32 -> vector<16x128xf32>
    %173 = vector.broadcast %18 : f32 to vector<16x128xf32>
    %174 = arith.mulf %173, %172 : vector<16x128xf32>
    %175 = arith.addf %171, %174 : vector<16x128xf32>
    %c123_i32_16 = arith.constant 123 : i32
    %176 = tpu.dynamic_rotate %157 by %c123_i32_16 dim 1 : vector<16x128xf32>, i32 -> vector<16x128xf32>
    %177 = vector.broadcast %19 : f32 to vector<16x128xf32>
    %178 = arith.mulf %177, %176 : vector<16x128xf32>
    %179 = arith.addf %175, %178 : vector<16x128xf32>
    %c122_i32_17 = arith.constant 122 : i32
    %180 = tpu.dynamic_rotate %157 by %c122_i32_17 dim 1 : vector<16x128xf32>, i32 -> vector<16x128xf32>
    %181 = vector.broadcast %20 : f32 to vector<16x128xf32>
    %182 = arith.mulf %181, %180 : vector<16x128xf32>
    %183 = arith.addf %179, %182 : vector<16x128xf32>
    %184 = vector.extract_strided_slice %101 {offsets = [3, 0], sizes = [16, 128], strides = [1, 1]} : vector<24x128xf32> to vector<16x128xf32>
    %185 = vector.broadcast %21 : f32 to vector<16x128xf32>
    %186 = arith.mulf %185, %184 : vector<16x128xf32>
    %c127_i32_18 = arith.constant 127 : i32
    %187 = tpu.dynamic_rotate %184 by %c127_i32_18 dim 1 : vector<16x128xf32>, i32 -> vector<16x128xf32>
    %188 = vector.broadcast %22 : f32 to vector<16x128xf32>
    %189 = arith.mulf %188, %187 : vector<16x128xf32>
    %190 = arith.addf %186, %189 : vector<16x128xf32>
    %c126_i32_19 = arith.constant 126 : i32
    %191 = tpu.dynamic_rotate %184 by %c126_i32_19 dim 1 : vector<16x128xf32>, i32 -> vector<16x128xf32>
    %192 = vector.broadcast %23 : f32 to vector<16x128xf32>
    %193 = arith.mulf %192, %191 : vector<16x128xf32>
    %194 = arith.addf %190, %193 : vector<16x128xf32>
    %c125_i32_20 = arith.constant 125 : i32
    %195 = tpu.dynamic_rotate %184 by %c125_i32_20 dim 1 : vector<16x128xf32>, i32 -> vector<16x128xf32>
    %196 = vector.broadcast %24 : f32 to vector<16x128xf32>
    %197 = arith.mulf %196, %195 : vector<16x128xf32>
    %198 = arith.addf %194, %197 : vector<16x128xf32>
    %c124_i32_21 = arith.constant 124 : i32
    %199 = tpu.dynamic_rotate %184 by %c124_i32_21 dim 1 : vector<16x128xf32>, i32 -> vector<16x128xf32>
    %200 = vector.broadcast %25 : f32 to vector<16x128xf32>
    %201 = arith.mulf %200, %199 : vector<16x128xf32>
    %202 = arith.addf %198, %201 : vector<16x128xf32>
    %c123_i32_22 = arith.constant 123 : i32
    %203 = tpu.dynamic_rotate %184 by %c123_i32_22 dim 1 : vector<16x128xf32>, i32 -> vector<16x128xf32>
    %204 = vector.broadcast %26 : f32 to vector<16x128xf32>
    %205 = arith.mulf %204, %203 : vector<16x128xf32>
    %206 = arith.addf %202, %205 : vector<16x128xf32>
    %c122_i32_23 = arith.constant 122 : i32
    %207 = tpu.dynamic_rotate %184 by %c122_i32_23 dim 1 : vector<16x128xf32>, i32 -> vector<16x128xf32>
    %208 = vector.broadcast %27 : f32 to vector<16x128xf32>
    %209 = arith.mulf %208, %207 : vector<16x128xf32>
    %210 = arith.addf %206, %209 : vector<16x128xf32>
    %211 = vector.extract_strided_slice %101 {offsets = [4, 0], sizes = [16, 128], strides = [1, 1]} : vector<24x128xf32> to vector<16x128xf32>
    %212 = vector.broadcast %28 : f32 to vector<16x128xf32>
    %213 = arith.mulf %212, %211 : vector<16x128xf32>
    %c127_i32_24 = arith.constant 127 : i32
    %214 = tpu.dynamic_rotate %211 by %c127_i32_24 dim 1 : vector<16x128xf32>, i32 -> vector<16x128xf32>
    %215 = vector.broadcast %29 : f32 to vector<16x128xf32>
    %216 = arith.mulf %215, %214 : vector<16x128xf32>
    %217 = arith.addf %213, %216 : vector<16x128xf32>
    %c126_i32_25 = arith.constant 126 : i32
    %218 = tpu.dynamic_rotate %211 by %c126_i32_25 dim 1 : vector<16x128xf32>, i32 -> vector<16x128xf32>
    %219 = vector.broadcast %30 : f32 to vector<16x128xf32>
    %220 = arith.mulf %219, %218 : vector<16x128xf32>
    %221 = arith.addf %217, %220 : vector<16x128xf32>
    %c125_i32_26 = arith.constant 125 : i32
    %222 = tpu.dynamic_rotate %211 by %c125_i32_26 dim 1 : vector<16x128xf32>, i32 -> vector<16x128xf32>
    %223 = vector.broadcast %31 : f32 to vector<16x128xf32>
    %224 = arith.mulf %223, %222 : vector<16x128xf32>
    %225 = arith.addf %221, %224 : vector<16x128xf32>
    %c124_i32_27 = arith.constant 124 : i32
    %226 = tpu.dynamic_rotate %211 by %c124_i32_27 dim 1 : vector<16x128xf32>, i32 -> vector<16x128xf32>
    %227 = vector.broadcast %32 : f32 to vector<16x128xf32>
    %228 = arith.mulf %227, %226 : vector<16x128xf32>
    %229 = arith.addf %225, %228 : vector<16x128xf32>
    %c123_i32_28 = arith.constant 123 : i32
    %230 = tpu.dynamic_rotate %211 by %c123_i32_28 dim 1 : vector<16x128xf32>, i32 -> vector<16x128xf32>
    %231 = vector.broadcast %33 : f32 to vector<16x128xf32>
    %232 = arith.mulf %231, %230 : vector<16x128xf32>
    %233 = arith.addf %229, %232 : vector<16x128xf32>
    %c122_i32_29 = arith.constant 122 : i32
    %234 = tpu.dynamic_rotate %211 by %c122_i32_29 dim 1 : vector<16x128xf32>, i32 -> vector<16x128xf32>
    %235 = vector.broadcast %34 : f32 to vector<16x128xf32>
    %236 = arith.mulf %235, %234 : vector<16x128xf32>
    %237 = arith.addf %233, %236 : vector<16x128xf32>
    %238 = vector.extract_strided_slice %101 {offsets = [5, 0], sizes = [16, 128], strides = [1, 1]} : vector<24x128xf32> to vector<16x128xf32>
    %239 = vector.broadcast %35 : f32 to vector<16x128xf32>
    %240 = arith.mulf %239, %238 : vector<16x128xf32>
    %c127_i32_30 = arith.constant 127 : i32
    %241 = tpu.dynamic_rotate %238 by %c127_i32_30 dim 1 : vector<16x128xf32>, i32 -> vector<16x128xf32>
    %242 = vector.broadcast %36 : f32 to vector<16x128xf32>
    %243 = arith.mulf %242, %241 : vector<16x128xf32>
    %244 = arith.addf %240, %243 : vector<16x128xf32>
    %c126_i32_31 = arith.constant 126 : i32
    %245 = tpu.dynamic_rotate %238 by %c126_i32_31 dim 1 : vector<16x128xf32>, i32 -> vector<16x128xf32>
    %246 = vector.broadcast %37 : f32 to vector<16x128xf32>
    %247 = arith.mulf %246, %245 : vector<16x128xf32>
    %248 = arith.addf %244, %247 : vector<16x128xf32>
    %c125_i32_32 = arith.constant 125 : i32
    %249 = tpu.dynamic_rotate %238 by %c125_i32_32 dim 1 : vector<16x128xf32>, i32 -> vector<16x128xf32>
    %250 = vector.broadcast %38 : f32 to vector<16x128xf32>
    %251 = arith.mulf %250, %249 : vector<16x128xf32>
    %252 = arith.addf %248, %251 : vector<16x128xf32>
    %c124_i32_33 = arith.constant 124 : i32
    %253 = tpu.dynamic_rotate %238 by %c124_i32_33 dim 1 : vector<16x128xf32>, i32 -> vector<16x128xf32>
    %254 = vector.broadcast %39 : f32 to vector<16x128xf32>
    %255 = arith.mulf %254, %253 : vector<16x128xf32>
    %256 = arith.addf %252, %255 : vector<16x128xf32>
    %c123_i32_34 = arith.constant 123 : i32
    %257 = tpu.dynamic_rotate %238 by %c123_i32_34 dim 1 : vector<16x128xf32>, i32 -> vector<16x128xf32>
    %258 = vector.broadcast %40 : f32 to vector<16x128xf32>
    %259 = arith.mulf %258, %257 : vector<16x128xf32>
    %260 = arith.addf %256, %259 : vector<16x128xf32>
    %c122_i32_35 = arith.constant 122 : i32
    %261 = tpu.dynamic_rotate %238 by %c122_i32_35 dim 1 : vector<16x128xf32>, i32 -> vector<16x128xf32>
    %262 = vector.broadcast %41 : f32 to vector<16x128xf32>
    %263 = arith.mulf %262, %261 : vector<16x128xf32>
    %264 = arith.addf %260, %263 : vector<16x128xf32>
    %265 = vector.extract_strided_slice %101 {offsets = [6, 0], sizes = [16, 128], strides = [1, 1]} : vector<24x128xf32> to vector<16x128xf32>
    %266 = vector.broadcast %42 : f32 to vector<16x128xf32>
    %267 = arith.mulf %266, %265 : vector<16x128xf32>
    %c127_i32_36 = arith.constant 127 : i32
    %268 = tpu.dynamic_rotate %265 by %c127_i32_36 dim 1 : vector<16x128xf32>, i32 -> vector<16x128xf32>
    %269 = vector.broadcast %43 : f32 to vector<16x128xf32>
    %270 = arith.mulf %269, %268 : vector<16x128xf32>
    %271 = arith.addf %267, %270 : vector<16x128xf32>
    %c126_i32_37 = arith.constant 126 : i32
    %272 = tpu.dynamic_rotate %265 by %c126_i32_37 dim 1 : vector<16x128xf32>, i32 -> vector<16x128xf32>
    %273 = vector.broadcast %44 : f32 to vector<16x128xf32>
    %274 = arith.mulf %273, %272 : vector<16x128xf32>
    %275 = arith.addf %271, %274 : vector<16x128xf32>
    %c125_i32_38 = arith.constant 125 : i32
    %276 = tpu.dynamic_rotate %265 by %c125_i32_38 dim 1 : vector<16x128xf32>, i32 -> vector<16x128xf32>
    %277 = vector.broadcast %45 : f32 to vector<16x128xf32>
    %278 = arith.mulf %277, %276 : vector<16x128xf32>
    %279 = arith.addf %275, %278 : vector<16x128xf32>
    %c124_i32_39 = arith.constant 124 : i32
    %280 = tpu.dynamic_rotate %265 by %c124_i32_39 dim 1 : vector<16x128xf32>, i32 -> vector<16x128xf32>
    %281 = vector.broadcast %46 : f32 to vector<16x128xf32>
    %282 = arith.mulf %281, %280 : vector<16x128xf32>
    %283 = arith.addf %279, %282 : vector<16x128xf32>
    %c123_i32_40 = arith.constant 123 : i32
    %284 = tpu.dynamic_rotate %265 by %c123_i32_40 dim 1 : vector<16x128xf32>, i32 -> vector<16x128xf32>
    %285 = vector.broadcast %47 : f32 to vector<16x128xf32>
    %286 = arith.mulf %285, %284 : vector<16x128xf32>
    %287 = arith.addf %283, %286 : vector<16x128xf32>
    %c122_i32_41 = arith.constant 122 : i32
    %288 = tpu.dynamic_rotate %265 by %c122_i32_41 dim 1 : vector<16x128xf32>, i32 -> vector<16x128xf32>
    %289 = vector.broadcast %48 : f32 to vector<16x128xf32>
    %290 = arith.mulf %289, %288 : vector<16x128xf32>
    %291 = arith.addf %287, %290 : vector<16x128xf32>
    %292 = vector.extract_strided_slice %102 {offsets = [0, 0], sizes = [16, 128], strides = [1, 1]} : vector<24x128xf32> to vector<16x128xf32>
    %293 = vector.broadcast %49 : f32 to vector<16x128xf32>
    %294 = arith.mulf %293, %292 : vector<16x128xf32>
    %c127_i32_42 = arith.constant 127 : i32
    %295 = tpu.dynamic_rotate %292 by %c127_i32_42 dim 1 : vector<16x128xf32>, i32 -> vector<16x128xf32>
    %296 = vector.broadcast %50 : f32 to vector<16x128xf32>
    %297 = arith.mulf %296, %295 : vector<16x128xf32>
    %298 = arith.addf %294, %297 : vector<16x128xf32>
    %c126_i32_43 = arith.constant 126 : i32
    %299 = tpu.dynamic_rotate %292 by %c126_i32_43 dim 1 : vector<16x128xf32>, i32 -> vector<16x128xf32>
    %300 = vector.broadcast %51 : f32 to vector<16x128xf32>
    %301 = arith.mulf %300, %299 : vector<16x128xf32>
    %302 = arith.addf %298, %301 : vector<16x128xf32>
    %c125_i32_44 = arith.constant 125 : i32
    %303 = tpu.dynamic_rotate %292 by %c125_i32_44 dim 1 : vector<16x128xf32>, i32 -> vector<16x128xf32>
    %304 = vector.broadcast %52 : f32 to vector<16x128xf32>
    %305 = arith.mulf %304, %303 : vector<16x128xf32>
    %306 = arith.addf %302, %305 : vector<16x128xf32>
    %c124_i32_45 = arith.constant 124 : i32
    %307 = tpu.dynamic_rotate %292 by %c124_i32_45 dim 1 : vector<16x128xf32>, i32 -> vector<16x128xf32>
    %308 = vector.broadcast %53 : f32 to vector<16x128xf32>
    %309 = arith.mulf %308, %307 : vector<16x128xf32>
    %310 = arith.addf %306, %309 : vector<16x128xf32>
    %c123_i32_46 = arith.constant 123 : i32
    %311 = tpu.dynamic_rotate %292 by %c123_i32_46 dim 1 : vector<16x128xf32>, i32 -> vector<16x128xf32>
    %312 = vector.broadcast %54 : f32 to vector<16x128xf32>
    %313 = arith.mulf %312, %311 : vector<16x128xf32>
    %314 = arith.addf %310, %313 : vector<16x128xf32>
    %c122_i32_47 = arith.constant 122 : i32
    %315 = tpu.dynamic_rotate %292 by %c122_i32_47 dim 1 : vector<16x128xf32>, i32 -> vector<16x128xf32>
    %316 = vector.broadcast %55 : f32 to vector<16x128xf32>
    %317 = arith.mulf %316, %315 : vector<16x128xf32>
    %318 = arith.addf %314, %317 : vector<16x128xf32>
    %319 = vector.extract_strided_slice %102 {offsets = [1, 0], sizes = [16, 128], strides = [1, 1]} : vector<24x128xf32> to vector<16x128xf32>
    %320 = vector.broadcast %56 : f32 to vector<16x128xf32>
    %321 = arith.mulf %320, %319 : vector<16x128xf32>
    %c127_i32_48 = arith.constant 127 : i32
    %322 = tpu.dynamic_rotate %319 by %c127_i32_48 dim 1 : vector<16x128xf32>, i32 -> vector<16x128xf32>
    %323 = vector.broadcast %57 : f32 to vector<16x128xf32>
    %324 = arith.mulf %323, %322 : vector<16x128xf32>
    %325 = arith.addf %321, %324 : vector<16x128xf32>
    %c126_i32_49 = arith.constant 126 : i32
    %326 = tpu.dynamic_rotate %319 by %c126_i32_49 dim 1 : vector<16x128xf32>, i32 -> vector<16x128xf32>
    %327 = vector.broadcast %58 : f32 to vector<16x128xf32>
    %328 = arith.mulf %327, %326 : vector<16x128xf32>
    %329 = arith.addf %325, %328 : vector<16x128xf32>
    %c125_i32_50 = arith.constant 125 : i32
    %330 = tpu.dynamic_rotate %319 by %c125_i32_50 dim 1 : vector<16x128xf32>, i32 -> vector<16x128xf32>
    %331 = vector.broadcast %59 : f32 to vector<16x128xf32>
    %332 = arith.mulf %331, %330 : vector<16x128xf32>
    %333 = arith.addf %329, %332 : vector<16x128xf32>
    %c124_i32_51 = arith.constant 124 : i32
    %334 = tpu.dynamic_rotate %319 by %c124_i32_51 dim 1 : vector<16x128xf32>, i32 -> vector<16x128xf32>
    %335 = vector.broadcast %60 : f32 to vector<16x128xf32>
    %336 = arith.mulf %335, %334 : vector<16x128xf32>
    %337 = arith.addf %333, %336 : vector<16x128xf32>
    %c123_i32_52 = arith.constant 123 : i32
    %338 = tpu.dynamic_rotate %319 by %c123_i32_52 dim 1 : vector<16x128xf32>, i32 -> vector<16x128xf32>
    %339 = vector.broadcast %61 : f32 to vector<16x128xf32>
    %340 = arith.mulf %339, %338 : vector<16x128xf32>
    %341 = arith.addf %337, %340 : vector<16x128xf32>
    %c122_i32_53 = arith.constant 122 : i32
    %342 = tpu.dynamic_rotate %319 by %c122_i32_53 dim 1 : vector<16x128xf32>, i32 -> vector<16x128xf32>
    %343 = vector.broadcast %62 : f32 to vector<16x128xf32>
    %344 = arith.mulf %343, %342 : vector<16x128xf32>
    %345 = arith.addf %341, %344 : vector<16x128xf32>
    %346 = vector.extract_strided_slice %102 {offsets = [2, 0], sizes = [16, 128], strides = [1, 1]} : vector<24x128xf32> to vector<16x128xf32>
    %347 = vector.broadcast %63 : f32 to vector<16x128xf32>
    %348 = arith.mulf %347, %346 : vector<16x128xf32>
    %c127_i32_54 = arith.constant 127 : i32
    %349 = tpu.dynamic_rotate %346 by %c127_i32_54 dim 1 : vector<16x128xf32>, i32 -> vector<16x128xf32>
    %350 = vector.broadcast %64 : f32 to vector<16x128xf32>
    %351 = arith.mulf %350, %349 : vector<16x128xf32>
    %352 = arith.addf %348, %351 : vector<16x128xf32>
    %c126_i32_55 = arith.constant 126 : i32
    %353 = tpu.dynamic_rotate %346 by %c126_i32_55 dim 1 : vector<16x128xf32>, i32 -> vector<16x128xf32>
    %354 = vector.broadcast %65 : f32 to vector<16x128xf32>
    %355 = arith.mulf %354, %353 : vector<16x128xf32>
    %356 = arith.addf %352, %355 : vector<16x128xf32>
    %c125_i32_56 = arith.constant 125 : i32
    %357 = tpu.dynamic_rotate %346 by %c125_i32_56 dim 1 : vector<16x128xf32>, i32 -> vector<16x128xf32>
    %358 = vector.broadcast %66 : f32 to vector<16x128xf32>
    %359 = arith.mulf %358, %357 : vector<16x128xf32>
    %360 = arith.addf %356, %359 : vector<16x128xf32>
    %c124_i32_57 = arith.constant 124 : i32
    %361 = tpu.dynamic_rotate %346 by %c124_i32_57 dim 1 : vector<16x128xf32>, i32 -> vector<16x128xf32>
    %362 = vector.broadcast %67 : f32 to vector<16x128xf32>
    %363 = arith.mulf %362, %361 : vector<16x128xf32>
    %364 = arith.addf %360, %363 : vector<16x128xf32>
    %c123_i32_58 = arith.constant 123 : i32
    %365 = tpu.dynamic_rotate %346 by %c123_i32_58 dim 1 : vector<16x128xf32>, i32 -> vector<16x128xf32>
    %366 = vector.broadcast %68 : f32 to vector<16x128xf32>
    %367 = arith.mulf %366, %365 : vector<16x128xf32>
    %368 = arith.addf %364, %367 : vector<16x128xf32>
    %c122_i32_59 = arith.constant 122 : i32
    %369 = tpu.dynamic_rotate %346 by %c122_i32_59 dim 1 : vector<16x128xf32>, i32 -> vector<16x128xf32>
    %370 = vector.broadcast %69 : f32 to vector<16x128xf32>
    %371 = arith.mulf %370, %369 : vector<16x128xf32>
    %372 = arith.addf %368, %371 : vector<16x128xf32>
    %373 = vector.extract_strided_slice %102 {offsets = [3, 0], sizes = [16, 128], strides = [1, 1]} : vector<24x128xf32> to vector<16x128xf32>
    %374 = vector.broadcast %70 : f32 to vector<16x128xf32>
    %375 = arith.mulf %374, %373 : vector<16x128xf32>
    %c127_i32_60 = arith.constant 127 : i32
    %376 = tpu.dynamic_rotate %373 by %c127_i32_60 dim 1 : vector<16x128xf32>, i32 -> vector<16x128xf32>
    %377 = vector.broadcast %71 : f32 to vector<16x128xf32>
    %378 = arith.mulf %377, %376 : vector<16x128xf32>
    %379 = arith.addf %375, %378 : vector<16x128xf32>
    %c126_i32_61 = arith.constant 126 : i32
    %380 = tpu.dynamic_rotate %373 by %c126_i32_61 dim 1 : vector<16x128xf32>, i32 -> vector<16x128xf32>
    %381 = vector.broadcast %72 : f32 to vector<16x128xf32>
    %382 = arith.mulf %381, %380 : vector<16x128xf32>
    %383 = arith.addf %379, %382 : vector<16x128xf32>
    %c125_i32_62 = arith.constant 125 : i32
    %384 = tpu.dynamic_rotate %373 by %c125_i32_62 dim 1 : vector<16x128xf32>, i32 -> vector<16x128xf32>
    %385 = vector.broadcast %73 : f32 to vector<16x128xf32>
    %386 = arith.mulf %385, %384 : vector<16x128xf32>
    %387 = arith.addf %383, %386 : vector<16x128xf32>
    %c124_i32_63 = arith.constant 124 : i32
    %388 = tpu.dynamic_rotate %373 by %c124_i32_63 dim 1 : vector<16x128xf32>, i32 -> vector<16x128xf32>
    %389 = vector.broadcast %74 : f32 to vector<16x128xf32>
    %390 = arith.mulf %389, %388 : vector<16x128xf32>
    %391 = arith.addf %387, %390 : vector<16x128xf32>
    %c123_i32_64 = arith.constant 123 : i32
    %392 = tpu.dynamic_rotate %373 by %c123_i32_64 dim 1 : vector<16x128xf32>, i32 -> vector<16x128xf32>
    %393 = vector.broadcast %75 : f32 to vector<16x128xf32>
    %394 = arith.mulf %393, %392 : vector<16x128xf32>
    %395 = arith.addf %391, %394 : vector<16x128xf32>
    %c122_i32_65 = arith.constant 122 : i32
    %396 = tpu.dynamic_rotate %373 by %c122_i32_65 dim 1 : vector<16x128xf32>, i32 -> vector<16x128xf32>
    %397 = vector.broadcast %76 : f32 to vector<16x128xf32>
    %398 = arith.mulf %397, %396 : vector<16x128xf32>
    %399 = arith.addf %395, %398 : vector<16x128xf32>
    %400 = vector.extract_strided_slice %102 {offsets = [4, 0], sizes = [16, 128], strides = [1, 1]} : vector<24x128xf32> to vector<16x128xf32>
    %401 = vector.broadcast %77 : f32 to vector<16x128xf32>
    %402 = arith.mulf %401, %400 : vector<16x128xf32>
    %c127_i32_66 = arith.constant 127 : i32
    %403 = tpu.dynamic_rotate %400 by %c127_i32_66 dim 1 : vector<16x128xf32>, i32 -> vector<16x128xf32>
    %404 = vector.broadcast %78 : f32 to vector<16x128xf32>
    %405 = arith.mulf %404, %403 : vector<16x128xf32>
    %406 = arith.addf %402, %405 : vector<16x128xf32>
    %c126_i32_67 = arith.constant 126 : i32
    %407 = tpu.dynamic_rotate %400 by %c126_i32_67 dim 1 : vector<16x128xf32>, i32 -> vector<16x128xf32>
    %408 = vector.broadcast %79 : f32 to vector<16x128xf32>
    %409 = arith.mulf %408, %407 : vector<16x128xf32>
    %410 = arith.addf %406, %409 : vector<16x128xf32>
    %c125_i32_68 = arith.constant 125 : i32
    %411 = tpu.dynamic_rotate %400 by %c125_i32_68 dim 1 : vector<16x128xf32>, i32 -> vector<16x128xf32>
    %412 = vector.broadcast %80 : f32 to vector<16x128xf32>
    %413 = arith.mulf %412, %411 : vector<16x128xf32>
    %414 = arith.addf %410, %413 : vector<16x128xf32>
    %c124_i32_69 = arith.constant 124 : i32
    %415 = tpu.dynamic_rotate %400 by %c124_i32_69 dim 1 : vector<16x128xf32>, i32 -> vector<16x128xf32>
    %416 = vector.broadcast %81 : f32 to vector<16x128xf32>
    %417 = arith.mulf %416, %415 : vector<16x128xf32>
    %418 = arith.addf %414, %417 : vector<16x128xf32>
    %c123_i32_70 = arith.constant 123 : i32
    %419 = tpu.dynamic_rotate %400 by %c123_i32_70 dim 1 : vector<16x128xf32>, i32 -> vector<16x128xf32>
    %420 = vector.broadcast %82 : f32 to vector<16x128xf32>
    %421 = arith.mulf %420, %419 : vector<16x128xf32>
    %422 = arith.addf %418, %421 : vector<16x128xf32>
    %c122_i32_71 = arith.constant 122 : i32
    %423 = tpu.dynamic_rotate %400 by %c122_i32_71 dim 1 : vector<16x128xf32>, i32 -> vector<16x128xf32>
    %424 = vector.broadcast %83 : f32 to vector<16x128xf32>
    %425 = arith.mulf %424, %423 : vector<16x128xf32>
    %426 = arith.addf %422, %425 : vector<16x128xf32>
    %427 = vector.extract_strided_slice %102 {offsets = [5, 0], sizes = [16, 128], strides = [1, 1]} : vector<24x128xf32> to vector<16x128xf32>
    %428 = vector.broadcast %84 : f32 to vector<16x128xf32>
    %429 = arith.mulf %428, %427 : vector<16x128xf32>
    %c127_i32_72 = arith.constant 127 : i32
    %430 = tpu.dynamic_rotate %427 by %c127_i32_72 dim 1 : vector<16x128xf32>, i32 -> vector<16x128xf32>
    %431 = vector.broadcast %85 : f32 to vector<16x128xf32>
    %432 = arith.mulf %431, %430 : vector<16x128xf32>
    %433 = arith.addf %429, %432 : vector<16x128xf32>
    %c126_i32_73 = arith.constant 126 : i32
    %434 = tpu.dynamic_rotate %427 by %c126_i32_73 dim 1 : vector<16x128xf32>, i32 -> vector<16x128xf32>
    %435 = vector.broadcast %86 : f32 to vector<16x128xf32>
    %436 = arith.mulf %435, %434 : vector<16x128xf32>
    %437 = arith.addf %433, %436 : vector<16x128xf32>
    %c125_i32_74 = arith.constant 125 : i32
    %438 = tpu.dynamic_rotate %427 by %c125_i32_74 dim 1 : vector<16x128xf32>, i32 -> vector<16x128xf32>
    %439 = vector.broadcast %87 : f32 to vector<16x128xf32>
    %440 = arith.mulf %439, %438 : vector<16x128xf32>
    %441 = arith.addf %437, %440 : vector<16x128xf32>
    %c124_i32_75 = arith.constant 124 : i32
    %442 = tpu.dynamic_rotate %427 by %c124_i32_75 dim 1 : vector<16x128xf32>, i32 -> vector<16x128xf32>
    %443 = vector.broadcast %88 : f32 to vector<16x128xf32>
    %444 = arith.mulf %443, %442 : vector<16x128xf32>
    %445 = arith.addf %441, %444 : vector<16x128xf32>
    %c123_i32_76 = arith.constant 123 : i32
    %446 = tpu.dynamic_rotate %427 by %c123_i32_76 dim 1 : vector<16x128xf32>, i32 -> vector<16x128xf32>
    %447 = vector.broadcast %89 : f32 to vector<16x128xf32>
    %448 = arith.mulf %447, %446 : vector<16x128xf32>
    %449 = arith.addf %445, %448 : vector<16x128xf32>
    %c122_i32_77 = arith.constant 122 : i32
    %450 = tpu.dynamic_rotate %427 by %c122_i32_77 dim 1 : vector<16x128xf32>, i32 -> vector<16x128xf32>
    %451 = vector.broadcast %90 : f32 to vector<16x128xf32>
    %452 = arith.mulf %451, %450 : vector<16x128xf32>
    %453 = arith.addf %449, %452 : vector<16x128xf32>
    %454 = vector.extract_strided_slice %102 {offsets = [6, 0], sizes = [16, 128], strides = [1, 1]} : vector<24x128xf32> to vector<16x128xf32>
    %455 = vector.broadcast %91 : f32 to vector<16x128xf32>
    %456 = arith.mulf %455, %454 : vector<16x128xf32>
    %c127_i32_78 = arith.constant 127 : i32
    %457 = tpu.dynamic_rotate %454 by %c127_i32_78 dim 1 : vector<16x128xf32>, i32 -> vector<16x128xf32>
    %458 = vector.broadcast %92 : f32 to vector<16x128xf32>
    %459 = arith.mulf %458, %457 : vector<16x128xf32>
    %460 = arith.addf %456, %459 : vector<16x128xf32>
    %c126_i32_79 = arith.constant 126 : i32
    %461 = tpu.dynamic_rotate %454 by %c126_i32_79 dim 1 : vector<16x128xf32>, i32 -> vector<16x128xf32>
    %462 = vector.broadcast %93 : f32 to vector<16x128xf32>
    %463 = arith.mulf %462, %461 : vector<16x128xf32>
    %464 = arith.addf %460, %463 : vector<16x128xf32>
    %c125_i32_80 = arith.constant 125 : i32
    %465 = tpu.dynamic_rotate %454 by %c125_i32_80 dim 1 : vector<16x128xf32>, i32 -> vector<16x128xf32>
    %466 = vector.broadcast %94 : f32 to vector<16x128xf32>
    %467 = arith.mulf %466, %465 : vector<16x128xf32>
    %468 = arith.addf %464, %467 : vector<16x128xf32>
    %c124_i32_81 = arith.constant 124 : i32
    %469 = tpu.dynamic_rotate %454 by %c124_i32_81 dim 1 : vector<16x128xf32>, i32 -> vector<16x128xf32>
    %470 = vector.broadcast %95 : f32 to vector<16x128xf32>
    %471 = arith.mulf %470, %469 : vector<16x128xf32>
    %472 = arith.addf %468, %471 : vector<16x128xf32>
    %c123_i32_82 = arith.constant 123 : i32
    %473 = tpu.dynamic_rotate %454 by %c123_i32_82 dim 1 : vector<16x128xf32>, i32 -> vector<16x128xf32>
    %474 = vector.broadcast %96 : f32 to vector<16x128xf32>
    %475 = arith.mulf %474, %473 : vector<16x128xf32>
    %476 = arith.addf %472, %475 : vector<16x128xf32>
    %c122_i32_83 = arith.constant 122 : i32
    %477 = tpu.dynamic_rotate %454 by %c122_i32_83 dim 1 : vector<16x128xf32>, i32 -> vector<16x128xf32>
    %478 = vector.broadcast %97 : f32 to vector<16x128xf32>
    %479 = arith.mulf %478, %477 : vector<16x128xf32>
    %480 = arith.addf %476, %479 : vector<16x128xf32>
    %481 = arith.addf %129, %156 : vector<16x128xf32>
    %482 = arith.addf %183, %210 : vector<16x128xf32>
    %483 = arith.addf %237, %264 : vector<16x128xf32>
    %484 = arith.addf %291, %318 : vector<16x128xf32>
    %485 = arith.addf %345, %372 : vector<16x128xf32>
    %486 = arith.addf %399, %426 : vector<16x128xf32>
    %487 = arith.addf %453, %480 : vector<16x128xf32>
    %488 = arith.addf %481, %482 : vector<16x128xf32>
    %489 = arith.addf %483, %484 : vector<16x128xf32>
    %490 = arith.addf %485, %486 : vector<16x128xf32>
    %491 = arith.addf %488, %489 : vector<16x128xf32>
    %492 = arith.addf %490, %487 : vector<16x128xf32>
    %493 = arith.addf %491, %492 : vector<16x128xf32>
    %494 = vector.broadcast %98 : f32 to vector<16x128xf32>
    %495 = arith.addf %493, %494 : vector<16x128xf32>
    %496 = arith.negf %495 : vector<16x128xf32>
    %497 = math.exp %496 : vector<16x128xf32>
    %cst_84 = arith.constant 1.000000e+00 : f32
    %498 = vector.broadcast %cst_84 : f32 to vector<16x128xf32>
    %499 = arith.addf %498, %497 : vector<16x128xf32>
    %500 = arith.divf %498, %499 : vector<16x128xf32>
    %c0_85 = arith.constant 0 : index
    %c0_86 = arith.constant 0 : index
    %c0_87 = arith.constant 0 : index
    %501 = vector.load %arg4[%c0_85, %c0_86, %c0_87] : memref<1x16x128xf32, #tpu.memory_space<vmem>>, vector<1x16x128xf32>
    %502 = vector.shape_cast %501 : vector<1x16x128xf32> to vector<16x128xf32>
    %503 = vector.shape_cast %500 : vector<16x128xf32> to vector<1x16x128xf32>
    tpu.vector_store %arg4[%c0_85, %c0_86, %c0_87], %503 {strides = array<i32>} : memref<1x16x128xf32, #tpu.memory_space<vmem>>, vector<1x16x128xf32>,
    return
  }
  func.func @transform_0(%arg0: i32) -> (i32, i32, i32, i32) {
    %c0_i32 = arith.constant 0 : i32
    %c0_i32_0 = arith.constant 0 : i32
    %c0_i32_1 = arith.constant 0 : i32
    %c0_i32_2 = arith.constant 0 : i32
    return %arg0, %c0_i32, %c0_i32_0, %c0_i32_1 : i32, i32, i32, i32
  }
  func.func @transform_1(%arg0: i32) -> i32 {
    %c0_i32 = arith.constant 0 : i32
    %c0_i32_0 = arith.constant 0 : i32
    return %c0_i32 : i32
  }
  func.func @transform_2(%arg0: i32) -> i32 {
    %c0_i32 = arith.constant 0 : i32
    %c0_i32_0 = arith.constant 0 : i32
    return %c0_i32 : i32
  }
  func.func @transform_3(%arg0: i32) -> (i32, i32, i32) {
    %c0_i32 = arith.constant 0 : i32
    %c0_i32_0 = arith.constant 0 : i32
    %c0_i32_1 = arith.constant 0 : i32
    return %arg0, %c0_i32, %c0_i32_0 : i32, i32, i32
  }
}

</mosaic_0001>

<llo_original>
// kernel: spatial_attention.1
$region0: #{spatial_attention.1}
  #allocation0 [shape = 'u32[]', space=smem, size = 0x4, offset = 0x4, fixed_abs, tag = 'smem constant byte address 0x4 - core index']
  #allocation1 [shape = 'u32[144,128]{1,0:T(1,128)}', space=vmem, size = 0x12000, scoped, tag = 'internal scratch']
  #allocation2 [shape = 'f32[1]{0:T(128)S(6)}', space=smem, size = 0x200, scoped, tag = 'scoped memory for spatial_attention.1']
  %s0 = inlined_call_operand.vmem [shape: f32[1,4,24,128], index: 0, kind: input, shape index: {}]
  %s1 = inlined_call_operand.vmem [shape: f32[98], index: 1, kind: input, shape index: {}]
  %s2 = inlined_call_operand.<no memory space> [shape: f32[1], index: 2, kind: input, shape index: {}]
  %s3 = inlined_call_operand.vmem [shape: f32[1,16,128], index: 3, kind: output, shape index: {}]
  %s4 = sld [smem:[#allocation0]]
  $region26: #{spatial_attention.1} parent=0
    _
  %s6 = ssub.s32 1, %s4
  %s7 = scalar_select 0, %s6, %s4
  %8 = sst [smem:[#allocation2]] %s2
  $region1: #{spatial_attention.1} parent=0
    #allocation3 [shape = 'u8[512]{0}', space=smem, size = 0x200, scoped, tag = 'input window, operand 1, single buffered']
    #allocation4 [shape = 's32[1]{0}', space=sflag, size = 0x4, scoped, tag = 'scoped memory for spatial_attention.1']
    %9 = vsyncpa [#allocation4], 0
    // Predicated region
    $region2: #{spatial_attention.1} parent=1 // pred_check
      _
    $region3: #{spatial_attention.1} parent=1 // pred_check_branch
      %11 = sbr.rel (0) target = $region5
    $region4: #{spatial_attention.1} parent=1 // pred_region
      _
    $region5: #{spatial_attention.1} parent=1 // pred_fallthru
      _
    // Predicated region
    $region6: #{spatial_attention.1} parent=1 // pred_check
      _
    $region7: #{spatial_attention.1} parent=1 // pred_check_branch
      %13 = sbr.rel (0) target = $region9
    $region8: #{spatial_attention.1} parent=1 // pred_region
      %s15 = ssub.s32 16, 16
      %16 = vsyncadd [#allocation4], %s15
      %s18 = sshll.u32 %s1, 4
      %s19 = int_to_ptr.vmem [resolvable:$true] %s18
      %21 = dma.vmem_to_smem %s19, 16, [#allocation3], [#allocation4]
    $region9: #{spatial_attention.1} parent=1 // pred_fallthru
      _
    // Predicated region
    $region10: #{spatial_attention.1} parent=1 // pred_check
      _
    $region11: #{spatial_attention.1} parent=1 // pred_check_branch
      %23 = sbr.rel (0) target = $region13
    $region12: #{spatial_attention.1} parent=1 // pred_region
      _
    $region13: #{spatial_attention.1} parent=1 // pred_fallthru
      _
    // Predicated region
    $region14: #{spatial_attention.1} parent=1 // pred_check
      _
    $region15: #{spatial_attention.1} parent=1 // pred_check_branch
      %25 = sbr.rel (0) target = $region17
    $region16: #{spatial_attention.1} parent=1 // pred_region
      %26 = dma.done [#allocation4], 16
    $region17: #{spatial_attention.1} parent=1 // pred_fallthru
      _
    %27 = sfence
    %s28 = sld [smem:[#allocation3]]
    %s29 = sld [smem:[#allocation3 + $0x1]]
    %s30 = sld [smem:[#allocation3 + $0x2]]
    %s31 = sld [smem:[#allocation3 + $0x3]]
    %s32 = sld [smem:[#allocation3 + $0x4]]
    %s33 = sld [smem:[#allocation3 + $0x5]]
    %s34 = sld [smem:[#allocation3 + $0x6]]
    %s35 = sld [smem:[#allocation3 + $0x7]]
    %s36 = sld [smem:[#allocation3 + $0x8]]
    %s37 = sld [smem:[#allocation3 + $0x9]]
    %s38 = sld [smem:[#allocation3 + $0xa]]
    %s39 = sld [smem:[#allocation3 + $0xb]]
    %s40 = sld [smem:[#allocation3 + $0xc]]
    %s41 = sld [smem:[#allocation3 + $0xd]]
    %s42 = sld [smem:[#allocation3 + $0xe]]
    %s43 = sld [smem:[#allocation3 + $0xf]]
    %s44 = sld [smem:[#allocation3 + $0x10]]
    %s45 = sld [smem:[#allocation3 + $0x11]]
    %s46 = sld [smem:[#allocation3 + $0x12]]
    %s47 = sld [smem:[#allocation3 + $0x13]]
    %s48 = sld [smem:[#allocation3 + $0x14]]
    %s49 = sld [smem:[#allocation3 + $0x15]]
    %s50 = sld [smem:[#allocation3 + $0x16]]
    %s51 = sld [smem:[#allocation3 + $0x17]]
    %s52 = sld [smem:[#allocation3 + $0x18]]
    %s53 = sld [smem:[#allocation3 + $0x19]]
    %s54 = sld [smem:[#allocation3 + $0x1a]]
    %s55 = sld [smem:[#allocation3 + $0x1b]]
    %s56 = sld [smem:[#allocation3 + $0x1c]]
    %s57 = sld [smem:[#allocation3 + $0x1d]]
    %s58 = sld [smem:[#allocation3 + $0x1e]]
    %s59 = sld [smem:[#allocation3 + $0x1f]]
    %s60 = sld [smem:[#allocation3 + $0x20]]
    %s61 = sld [smem:[#allocation3 + $0x21]]
    %s62 = sld [smem:[#allocation3 + $0x22]]
    %s63 = sld [smem:[#allocation3 + $0x23]]
    %s64 = sld [smem:[#allocation3 + $0x24]]
    %s65 = sld [smem:[#allocation3 + $0x25]]
    %s66 = sld [smem:[#allocation3 + $0x26]]
    %s67 = sld [smem:[#allocation3 + $0x27]]
    %s68 = sld [smem:[#allocation3 + $0x28]]
    %s69 = sld [smem:[#allocation3 + $0x29]]
    %s70 = sld [smem:[#allocation3 + $0x2a]]
    %s71 = sld [smem:[#allocation3 + $0x2b]]
    %s72 = sld [smem:[#allocation3 + $0x2c]]
    %s73 = sld [smem:[#allocation3 + $0x2d]]
    %s74 = sld [smem:[#allocation3 + $0x2e]]
    %s75 = sld [smem:[#allocation3 + $0x2f]]
    %s76 = sld [smem:[#allocation3 + $0x30]]
    %s77 = sld [smem:[#allocation3 + $0x31]]
    %s78 = sld [smem:[#allocation3 + $0x32]]
    %s79 = sld [smem:[#allocation3 + $0x33]]
    %s80 = sld [smem:[#allocation3 + $0x34]]
    %s81 = sld [smem:[#allocation3 + $0x35]]
    %s82 = sld [smem:[#allocation3 + $0x36]]
    %s83 = sld [smem:[#allocation3 + $0x37]]
    %s84 = sld [smem:[#allocation3 + $0x38]]
    %s85 = sld [smem:[#allocation3 + $0x39]]
    %s86 = sld [smem:[#allocation3 + $0x3a]]
    %s87 = sld [smem:[#allocation3 + $0x3b]]
    %s88 = sld [smem:[#allocation3 + $0x3c]]
    %s89 = sld [smem:[#allocation3 + $0x3d]]
    %s90 = sld [smem:[#allocation3 + $0x3e]]
    %s91 = sld [smem:[#allocation3 + $0x3f]]
    %s92 = sld [smem:[#allocation3 + $0x40]]
    %s93 = sld [smem:[#allocation3 + $0x41]]
    %s94 = sld [smem:[#allocation3 + $0x42]]
    %s95 = sld [smem:[#allocation3 + $0x43]]
    %s96 = sld [smem:[#allocation3 + $0x44]]
    %s97 = sld [smem:[#allocation3 + $0x45]]
    %s98 = sld [smem:[#allocation3 + $0x46]]
    %s99 = sld [smem:[#allocation3 + $0x47]]
    %s100 = sld [smem:[#allocation3 + $0x48]]
    %s101 = sld [smem:[#allocation3 + $0x49]]
    %s102 = sld [smem:[#allocation3 + $0x4a]]
    %s103 = sld [smem:[#allocation3 + $0x4b]]
    %s104 = sld [smem:[#allocation3 + $0x4c]]
    %s105 = sld [smem:[#allocation3 + $0x4d]]
    %s106 = sld [smem:[#allocation3 + $0x4e]]
    %s107 = sld [smem:[#allocation3 + $0x4f]]
    %s108 = sld [smem:[#allocation3 + $0x50]]
    %s109 = sld [smem:[#allocation3 + $0x51]]
    %s110 = sld [smem:[#allocation3 + $0x52]]
    %s111 = sld [smem:[#allocation3 + $0x53]]
    %s112 = sld [smem:[#allocation3 + $0x54]]
    %s113 = sld [smem:[#allocation3 + $0x55]]
    %s114 = sld [smem:[#allocation3 + $0x56]]
    %s115 = sld [smem:[#allocation3 + $0x57]]
    %s116 = sld [smem:[#allocation3 + $0x58]]
    %s117 = sld [smem:[#allocation3 + $0x59]]
    %s118 = sld [smem:[#allocation3 + $0x5a]]
    %s119 = sld [smem:[#allocation3 + $0x5b]]
    %s120 = sld [smem:[#allocation3 + $0x5c]]
    %s121 = sld [smem:[#allocation3 + $0x5d]]
    %s122 = sld [smem:[#allocation3 + $0x5e]]
    %s123 = sld [smem:[#allocation3 + $0x5f]]
    %s124 = sld [smem:[#allocation3 + $0x60]]
    %s125 = sld [smem:[#allocation3 + $0x61]]
    %s126 = sld [smem:[#allocation2]]
    %v127 = vld [vmem:[%s0] sm:$0xff]
    %v128 = vld [vmem:[%s0 + $0x8] sm:$0xff]
    %v129 = vld [vmem:[%s0 + $0x10] sm:$0xff]
    %v130 = vld [vmem:[%s0 + $0x18] sm:$0xff]
    %v131 = vld [vmem:[%s0 + $0x20] sm:$0xff]
    %v132 = vld [vmem:[%s0 + $0x28] sm:$0xff]
    %v133 = vld [vmem:[%s0 + $0x30] sm:$0xff]
    %v134 = vld [vmem:[%s0 + $0x38] sm:$0xff]
    %v135 = vld [vmem:[%s0 + $0x40] sm:$0xff]
    %v136 = vld [vmem:[%s0 + $0x48] sm:$0xff]
    %v137 = vld [vmem:[%s0 + $0x50] sm:$0xff]
    %v138 = vld [vmem:[%s0 + $0x58] sm:$0xff]
    %v139 = vadd.f32 %v127, %v130
    %v140 = vadd.f32 %v139, %v133
    %v141 = vadd.f32 %v140, %v136
    %v142 = vadd.f32 %v128, %v131
    %v143 = vadd.f32 %v142, %v134
    %v144 = vadd.f32 %v143, %v137
    %v145 = vadd.f32 %v129, %v132
    %v146 = vadd.f32 %v145, %v135
    %v147 = vadd.f32 %v146, %v138
    %v148 = vmax.f32 %v127, %v133
    %v149 = vmax.f32 %v130, %v136
    %v150 = vmax.f32 %v148, %v149
    %v151 = vmax.f32 %v128, %v134
    %v152 = vmax.f32 %v131, %v137
    %v153 = vmax.f32 %v151, %v152
    %v154 = vmax.f32 %v129, %v135
    %v155 = vmax.f32 %v132, %v138
    %v156 = vmax.f32 %v154, %v155
    %v157 = vstv %s28
    %v158 = vmul.f32 %v157, %v141
    %v159 = vmul.f32 %v157, %v144
    %160 = vrot.lane.b32.xlu0 %v141, 127
    %v161 = vpop.permute.xlu0 %160
    %162 = vrot.lane.b32.xlu0 %v144, 127
    %v163 = vpop.permute.xlu0 %162
    %v164 = vstv %s29
    %v165 = vmul.f32 %v164, %v161
    %v166 = vmul.f32 %v164, %v163
    %v167 = vadd.f32 %v158, %v165
    %v168 = vadd.f32 %v159, %v166
    %169 = vrot.lane.b32.xlu0 %v141, 126
    %v170 = vpop.permute.xlu0 %169
    %171 = vrot.lane.b32.xlu0 %v144, 126
    %v172 = vpop.permute.xlu0 %171
    %v173 = vstv %s30
    %v174 = vmul.f32 %v173, %v170
    %v175 = vmul.f32 %v173, %v172
    %v176 = vadd.f32 %v167, %v174
    %v177 = vadd.f32 %v168, %v175
    %178 = vrot.lane.b32.xlu0 %v141, 125
    %v179 = vpop.permute.xlu0 %178
    %180 = vrot.lane.b32.xlu0 %v144, 125
    %v181 = vpop.permute.xlu0 %180
    %v182 = vstv %s31
    %v183 = vmul.f32 %v182, %v179
    %v184 = vmul.f32 %v182, %v181
    %v185 = vadd.f32 %v176, %v183
    %v186 = vadd.f32 %v177, %v184
    %187 = vrot.lane.b32.xlu0 %v141, 124
    %v188 = vpop.permute.xlu0 %187
    %189 = vrot.lane.b32.xlu0 %v144, 124
    %v190 = vpop.permute.xlu0 %189
    %v191 = vstv %s32
    %v192 = vmul.f32 %v191, %v188
    %v193 = vmul.f32 %v191, %v190
    %v194 = vadd.f32 %v185, %v192
    %v195 = vadd.f32 %v186, %v193
    %196 = vrot.lane.b32.xlu0 %v141, 123
    %v197 = vpop.permute.xlu0 %196
    %198 = vrot.lane.b32.xlu0 %v144, 123
    %v199 = vpop.permute.xlu0 %198
    %v200 = vstv %s33
    %v201 = vmul.f32 %v200, %v197
    %v202 = vmul.f32 %v200, %v199
    %v203 = vadd.f32 %v194, %v201
    %v204 = vadd.f32 %v195, %v202
    %205 = vrot.lane.b32.xlu0 %v141, 122
    %v206 = vpop.permute.xlu0 %205
    %207 = vrot.lane.b32.xlu0 %v144, 122
    %v208 = vpop.permute.xlu0 %207
    %v209 = vstv %s34
    %v210 = vmul.f32 %v209, %v206
    %v211 = vmul.f32 %v209, %v208
    %v212 = vadd.f32 %v203, %v210
    %v213 = vadd.f32 %v204, %v211
    %v214 = vstv %s35
    %v215 = vmul.f32 %v214, %v141
    %v216 = vmul.f32 %v214, %v144
    %v217 = vmul.f32 %v214, %v147
    %vm221 = vcmask 1046528
    %v222 = vrot.slane %v141, 1
    %v223 = vrot.slane %v144, 1
    %v224 = vsel %vm221, %v222, %v223
    %v225 = vrot.slane %v147, 1
    %v226 = vsel %vm221, %v223, %v225
    %229 = vrot.lane.b32.xlu0 %v224, 127
    %v230 = vpop.permute.xlu0 %229
    %231 = vrot.lane.b32.xlu0 %v226, 127
    %v232 = vpop.permute.xlu0 %231
    %v233 = vstv %s36
    %v234 = vmul.f32 %v233, %v230
    %v235 = vmul.f32 %v233, %v232
    %vm238 = vcmask 1040384
    %v239 = vrot.slane %v234, 7
    %v240 = vrot.slane %v235, 7
    %v241 = vsel %vm238, %v239, %v240
    %v245 = vadd.f32 %v215, %v239
    %v246 = vadd.f32 %v216, %v241
    %v247 = vadd.f32 %v217, %v240
    %248 = vrot.lane.b32.xlu0 %v224, 126
    %v249 = vpop.permute.xlu0 %248
    %250 = vrot.lane.b32.xlu0 %v226, 126
    %v251 = vpop.permute.xlu0 %250
    %v252 = vstv %s37
    %v253 = vmul.f32 %v252, %v249
    %v254 = vmul.f32 %v252, %v251
    %v257 = vrot.slane %v253, 7
    %v258 = vrot.slane %v254, 7
    %v259 = vsel %vm238, %v257, %v258
    %v263 = vadd.f32 %v245, %v257
    %v264 = vadd.f32 %v246, %v259
    %v265 = vadd.f32 %v247, %v258
    %266 = vrot.lane.b32.xlu0 %v224, 125
    %v267 = vpop.permute.xlu0 %266
    %268 = vrot.lane.b32.xlu0 %v226, 125
    %v269 = vpop.permute.xlu0 %268
    %v270 = vstv %s38
    %v271 = vmul.f32 %v270, %v267
    %v272 = vmul.f32 %v270, %v269
    %v275 = vrot.slane %v271, 7
    %v276 = vrot.slane %v272, 7
    %v277 = vsel %vm238, %v275, %v276
    %v281 = vadd.f32 %v263, %v275
    %v282 = vadd.f32 %v264, %v277
    %v283 = vadd.f32 %v265, %v276
    %284 = vrot.lane.b32.xlu0 %v224, 124
    %v285 = vpop.permute.xlu0 %284
    %286 = vrot.lane.b32.xlu0 %v226, 124
    %v287 = vpop.permute.xlu0 %286
    %v288 = vstv %s39
    %v289 = vmul.f32 %v288, %v285
    %v290 = vmul.f32 %v288, %v287
    %v293 = vrot.slane %v289, 7
    %v294 = vrot.slane %v290, 7
    %v295 = vsel %vm238, %v293, %v294
    %v299 = vadd.f32 %v281, %v293
    %v300 = vadd.f32 %v282, %v295
    %v301 = vadd.f32 %v283, %v294
    %302 = vrot.lane.b32.xlu0 %v224, 123
    %v303 = vpop.permute.xlu0 %302
    %304 = vrot.lane.b32.xlu0 %v226, 123
    %v305 = vpop.permute.xlu0 %304
    %v306 = vstv %s40
    %v307 = vmul.f32 %v306, %v303
    %v308 = vmul.f32 %v306, %v305
    %v311 = vrot.slane %v307, 7
    %v312 = vrot.slane %v308, 7
    %v313 = vsel %vm238, %v311, %v312
    %v317 = vadd.f32 %v299, %v311
    %v318 = vadd.f32 %v300, %v313
    %v319 = vadd.f32 %v301, %v312
    %320 = vrot.lane.b32.xlu0 %v224, 122
    %v321 = vpop.permute.xlu0 %320
    %322 = vrot.lane.b32.xlu0 %v226, 122
    %v323 = vpop.permute.xlu0 %322
    %v324 = vstv %s41
    %v325 = vmul.f32 %v324, %v321
    %v326 = vmul.f32 %v324, %v323
    %v329 = vrot.slane %v325, 7
    %v330 = vrot.slane %v326, 7
    %v331 = vsel %vm238, %v329, %v330
    %v335 = vadd.f32 %v317, %v329
    %v336 = vadd.f32 %v318, %v331
    %v337 = vadd.f32 %v319, %v330
    %v338 = vstv %s42
    %v339 = vmul.f32 %v338, %v141
    %v340 = vmul.f32 %v338, %v144
    %v341 = vmul.f32 %v338, %v147
    %vm342 = vcmask 1045504
    %v343 = vrot.slane %v141, 2
    %v344 = vrot.slane %v144, 2
    %v345 = vsel %vm342, %v343, %v344
    %v346 = vrot.slane %v147, 2
    %v347 = vsel %vm342, %v344, %v346
    %350 = vrot.lane.b32.xlu0 %v345, 127
    %v351 = vpop.permute.xlu0 %350
    %352 = vrot.lane.b32.xlu0 %v347, 127
    %v353 = vpop.permute.xlu0 %352
    %v354 = vstv %s43
    %v355 = vmul.f32 %v354, %v351
    %v356 = vmul.f32 %v354, %v353
    %vm359 = vcmask 1041408
    %v360 = vrot.slane %v355, 6
    %v361 = vrot.slane %v356, 6
    %v362 = vsel %vm359, %v360, %v361
    %v366 = vadd.f32 %v339, %v360
    %v367 = vadd.f32 %v340, %v362
    %v368 = vadd.f32 %v341, %v361
    %369 = vrot.lane.b32.xlu0 %v345, 126
    %v370 = vpop.permute.xlu0 %369
    %371 = vrot.lane.b32.xlu0 %v347, 126
    %v372 = vpop.permute.xlu0 %371
    %v373 = vstv %s44
    %v374 = vmul.f32 %v373, %v370
    %v375 = vmul.f32 %v373, %v372
    %v378 = vrot.slane %v374, 6
    %v379 = vrot.slane %v375, 6
    %v380 = vsel %vm359, %v378, %v379
    %v384 = vadd.f32 %v366, %v378
    %v385 = vadd.f32 %v367, %v380
    %v386 = vadd.f32 %v368, %v379
    %387 = vrot.lane.b32.xlu0 %v345, 125
    %v388 = vpop.permute.xlu0 %387
    %389 = vrot.lane.b32.xlu0 %v347, 125
    %v390 = vpop.permute.xlu0 %389
    %v391 = vstv %s45
    %v392 = vmul.f32 %v391, %v388
    %v393 = vmul.f32 %v391, %v390
    %v396 = vrot.slane %v392, 6
    %v397 = vrot.slane %v393, 6
    %v398 = vsel %vm359, %v396, %v397
    %v402 = vadd.f32 %v384, %v396
    %v403 = vadd.f32 %v385, %v398
    %v404 = vadd.f32 %v386, %v397
    %405 = vrot.lane.b32.xlu0 %v345, 124
    %v406 = vpop.permute.xlu0 %405
    %407 = vrot.lane.b32.xlu0 %v347, 124
    %v408 = vpop.permute.xlu0 %407
    %v409 = vstv %s46
    %v410 = vmul.f32 %v409, %v406
    %v411 = vmul.f32 %v409, %v408
    %v414 = vrot.slane %v410, 6
    %v415 = vrot.slane %v411, 6
    %v416 = vsel %vm359, %v414, %v415
    %v420 = vadd.f32 %v402, %v414
    %v421 = vadd.f32 %v403, %v416
    %v422 = vadd.f32 %v404, %v415
    %423 = vrot.lane.b32.xlu0 %v345, 123
    %v424 = vpop.permute.xlu0 %423
    %425 = vrot.lane.b32.xlu0 %v347, 123
    %v426 = vpop.permute.xlu0 %425
    %v427 = vstv %s47
    %v428 = vmul.f32 %v427, %v424
    %v429 = vmul.f32 %v427, %v426
    %v432 = vrot.slane %v428, 6
    %v433 = vrot.slane %v429, 6
    %v434 = vsel %vm359, %v432, %v433
    %v438 = vadd.f32 %v420, %v432
    %v439 = vadd.f32 %v421, %v434
    %v440 = vadd.f32 %v422, %v433
    %441 = vrot.lane.b32.xlu0 %v345, 122
    %v442 = vpop.permute.xlu0 %441
    %443 = vrot.lane.b32.xlu0 %v347, 122
    %v444 = vpop.permute.xlu0 %443
    %v445 = vstv %s48
    %v446 = vmul.f32 %v445, %v442
    %v447 = vmul.f32 %v445, %v444
    %v450 = vrot.slane %v446, 6
    %v451 = vrot.slane %v447, 6
    %v452 = vsel %vm359, %v450, %v451
    %v456 = vadd.f32 %v438, %v450
    %v457 = vadd.f32 %v439, %v452
    %v458 = vadd.f32 %v440, %v451
    %v459 = vstv %s49
    %v460 = vmul.f32 %v459, %v141
    %v461 = vmul.f32 %v459, %v144
    %v462 = vmul.f32 %v459, %v147
    %vm463 = vcmask 1044480
    %v464 = vrot.slane %v141, 3
    %v465 = vrot.slane %v144, 3
    %v466 = vsel %vm463, %v464, %v465
    %v467 = vrot.slane %v147, 3
    %v468 = vsel %vm463, %v465, %v467
    %471 = vrot.lane.b32.xlu0 %v466, 127
    %v472 = vpop.permute.xlu0 %471
    %473 = vrot.lane.b32.xlu0 %v468, 127
    %v474 = vpop.permute.xlu0 %473
    %v475 = vstv %s50
    %v476 = vmul.f32 %v475, %v472
    %v477 = vmul.f32 %v475, %v474
    %vm480 = vcmask 1042432
    %v481 = vrot.slane %v476, 5
    %v482 = vrot.slane %v477, 5
    %v483 = vsel %vm480, %v481, %v482
    %v487 = vadd.f32 %v460, %v481
    %v488 = vadd.f32 %v461, %v483
    %v489 = vadd.f32 %v462, %v482
    %490 = vrot.lane.b32.xlu0 %v466, 126
    %v491 = vpop.permute.xlu0 %490
    %492 = vrot.lane.b32.xlu0 %v468, 126
    %v493 = vpop.permute.xlu0 %492
    %v494 = vstv %s51
    %v495 = vmul.f32 %v494, %v491
    %v496 = vmul.f32 %v494, %v493
    %v499 = vrot.slane %v495, 5
    %v500 = vrot.slane %v496, 5
    %v501 = vsel %vm480, %v499, %v500
    %v505 = vadd.f32 %v487, %v499
    %v506 = vadd.f32 %v488, %v501
    %v507 = vadd.f32 %v489, %v500
    %508 = vrot.lane.b32.xlu0 %v466, 125
    %v509 = vpop.permute.xlu0 %508
    %510 = vrot.lane.b32.xlu0 %v468, 125
    %v511 = vpop.permute.xlu0 %510
    %v512 = vstv %s52
    %v513 = vmul.f32 %v512, %v509
    %v514 = vmul.f32 %v512, %v511
    %v517 = vrot.slane %v513, 5
    %v518 = vrot.slane %v514, 5
    %v519 = vsel %vm480, %v517, %v518
    %v523 = vadd.f32 %v505, %v517
    %v524 = vadd.f32 %v506, %v519
    %v525 = vadd.f32 %v507, %v518
    %526 = vrot.lane.b32.xlu0 %v466, 124
    %v527 = vpop.permute.xlu0 %526
    %528 = vrot.lane.b32.xlu0 %v468, 124
    %v529 = vpop.permute.xlu0 %528
    %v530 = vstv %s53
    %v531 = vmul.f32 %v530, %v527
    %v532 = vmul.f32 %v530, %v529
    %v535 = vrot.slane %v531, 5
    %v536 = vrot.slane %v532, 5
    %v537 = vsel %vm480, %v535, %v536
    %v541 = vadd.f32 %v523, %v535
    %v542 = vadd.f32 %v524, %v537
    %v543 = vadd.f32 %v525, %v536
    %544 = vrot.lane.b32.xlu0 %v466, 123
    %v545 = vpop.permute.xlu0 %544
    %546 = vrot.lane.b32.xlu0 %v468, 123
    %v547 = vpop.permute.xlu0 %546
    %v548 = vstv %s54
    %v549 = vmul.f32 %v548, %v545
    %v550 = vmul.f32 %v548, %v547
    %v553 = vrot.slane %v549, 5
    %v554 = vrot.slane %v550, 5
    %v555 = vsel %vm480, %v553, %v554
    %v559 = vadd.f32 %v541, %v553
    %v560 = vadd.f32 %v542, %v555
    %v561 = vadd.f32 %v543, %v554
    %562 = vrot.lane.b32.xlu0 %v466, 122
    %v563 = vpop.permute.xlu0 %562
    %564 = vrot.lane.b32.xlu0 %v468, 122
    %v565 = vpop.permute.xlu0 %564
    %v566 = vstv %s55
    %v567 = vmul.f32 %v566, %v563
    %v568 = vmul.f32 %v566, %v565
    %v571 = vrot.slane %v567, 5
    %v572 = vrot.slane %v568, 5
    %v573 = vsel %vm480, %v571, %v572
    %v577 = vadd.f32 %v559, %v571
    %v578 = vadd.f32 %v560, %v573
    %v579 = vadd.f32 %v561, %v572
    %v580 = vstv %s56
    %v581 = vmul.f32 %v580, %v141
    %v582 = vmul.f32 %v580, %v144
    %v583 = vmul.f32 %v580, %v147
    %vm584 = vcmask 1043456
    %v585 = vrot.slane %v141, 4
    %v586 = vrot.slane %v144, 4
    %v587 = vsel %vm584, %v585, %v586
    %v588 = vrot.slane %v147, 4
    %v589 = vsel %vm584, %v586, %v588
    %592 = vrot.lane.b32.xlu0 %v587, 127
    %v593 = vpop.permute.xlu0 %592
    %594 = vrot.lane.b32.xlu0 %v589, 127
    %v595 = vpop.permute.xlu0 %594
    %v596 = vstv %s57
    %v597 = vmul.f32 %v596, %v593
    %v598 = vmul.f32 %v596, %v595
    %v601 = vrot.slane %v597, 4
    %v602 = vrot.slane %v598, 4
    %v603 = vsel %vm584, %v601, %v602
    %v607 = vadd.f32 %v581, %v601
    %v608 = vadd.f32 %v582, %v603
    %v609 = vadd.f32 %v583, %v602
    %610 = vrot.lane.b32.xlu0 %v587, 126
    %v611 = vpop.permute.xlu0 %610
    %612 = vrot.lane.b32.xlu0 %v589, 126
    %v613 = vpop.permute.xlu0 %612
    %v614 = vstv %s58
    %v615 = vmul.f32 %v614, %v611
    %v616 = vmul.f32 %v614, %v613
    %v619 = vrot.slane %v615, 4
    %v620 = vrot.slane %v616, 4
    %v621 = vsel %vm584, %v619, %v620
    %v625 = vadd.f32 %v607, %v619
    %v626 = vadd.f32 %v608, %v621
    %v627 = vadd.f32 %v609, %v620
    %628 = vrot.lane.b32.xlu0 %v587, 125
    %v629 = vpop.permute.xlu0 %628
    %630 = vrot.lane.b32.xlu0 %v589, 125
    %v631 = vpop.permute.xlu0 %630
    %v632 = vstv %s59
    %v633 = vmul.f32 %v632, %v629
    %v634 = vmul.f32 %v632, %v631
    %v637 = vrot.slane %v633, 4
    %v638 = vrot.slane %v634, 4
    %v639 = vsel %vm584, %v637, %v638
    %v643 = vadd.f32 %v625, %v637
    %v644 = vadd.f32 %v626, %v639
    %v645 = vadd.f32 %v627, %v638
    %646 = vrot.lane.b32.xlu0 %v587, 124
    %v647 = vpop.permute.xlu0 %646
    %648 = vrot.lane.b32.xlu0 %v589, 124
    %v649 = vpop.permute.xlu0 %648
    %v650 = vstv %s60
    %v651 = vmul.f32 %v650, %v647
    %v652 = vmul.f32 %v650, %v649
    %v655 = vrot.slane %v651, 4
    %v656 = vrot.slane %v652, 4
    %v657 = vsel %vm584, %v655, %v656
    %v661 = vadd.f32 %v643, %v655
    %v662 = vadd.f32 %v644, %v657
    %v663 = vadd.f32 %v645, %v656
    %664 = vrot.lane.b32.xlu0 %v587, 123
    %v665 = vpop.permute.xlu0 %664
    %666 = vrot.lane.b32.xlu0 %v589, 123
    %v667 = vpop.permute.xlu0 %666
    %v668 = vstv %s61
    %v669 = vmul.f32 %v668, %v665
    %v670 = vmul.f32 %v668, %v667
    %v673 = vrot.slane %v669, 4
    %v674 = vrot.slane %v670, 4
    %v675 = vsel %vm584, %v673, %v674
    %v679 = vadd.f32 %v661, %v673
    %v680 = vadd.f32 %v662, %v675
    %v681 = vadd.f32 %v663, %v674
    %682 = vrot.lane.b32.xlu0 %v587, 122
    %v683 = vpop.permute.xlu0 %682
    %684 = vrot.lane.b32.xlu0 %v589, 122
    %v685 = vpop.permute.xlu0 %684
    %v686 = vstv %s62
    %v687 = vmul.f32 %v686, %v683
    %v688 = vmul.f32 %v686, %v685
    %v691 = vrot.slane %v687, 4
    %v692 = vrot.slane %v688, 4
    %v693 = vsel %vm584, %v691, %v692
    %v697 = vadd.f32 %v679, %v691
    %v698 = vadd.f32 %v680, %v693
    %v699 = vadd.f32 %v681, %v692
    %v700 = vstv %s63
    %v701 = vmul.f32 %v700, %v141
    %v702 = vmul.f32 %v700, %v144
    %v703 = vmul.f32 %v700, %v147
    %v704 = vrot.slane %v141, 5
    %v705 = vrot.slane %v144, 5
    %v706 = vsel %vm480, %v704, %v705
    %v707 = vrot.slane %v147, 5
    %v708 = vsel %vm480, %v705, %v707
    %711 = vrot.lane.b32.xlu0 %v706, 127
    %v712 = vpop.permute.xlu0 %711
    %713 = vrot.lane.b32.xlu0 %v708, 127
    %v714 = vpop.permute.xlu0 %713
    %v715 = vstv %s64
    %v716 = vmul.f32 %v715, %v712
    %v717 = vmul.f32 %v715, %v714
    %v720 = vrot.slane %v716, 3
    %v721 = vrot.slane %v717, 3
    %v722 = vsel %vm463, %v720, %v721
    %v726 = vadd.f32 %v701, %v720
    %v727 = vadd.f32 %v702, %v722
    %v728 = vadd.f32 %v703, %v721
    %729 = vrot.lane.b32.xlu0 %v706, 126
    %v730 = vpop.permute.xlu0 %729
    %731 = vrot.lane.b32.xlu0 %v708, 126
    %v732 = vpop.permute.xlu0 %731
    %v733 = vstv %s65
    %v734 = vmul.f32 %v733, %v730
    %v735 = vmul.f32 %v733, %v732
    %v738 = vrot.slane %v734, 3
    %v739 = vrot.slane %v735, 3
    %v740 = vsel %vm463, %v738, %v739
    %v744 = vadd.f32 %v726, %v738
    %v745 = vadd.f32 %v727, %v740
    %v746 = vadd.f32 %v728, %v739
    %747 = vrot.lane.b32.xlu0 %v706, 125
    %v748 = vpop.permute.xlu0 %747
    %749 = vrot.lane.b32.xlu0 %v708, 125
    %v750 = vpop.permute.xlu0 %749
    %v751 = vstv %s66
    %v752 = vmul.f32 %v751, %v748
    %v753 = vmul.f32 %v751, %v750
    %v756 = vrot.slane %v752, 3
    %v757 = vrot.slane %v753, 3
    %v758 = vsel %vm463, %v756, %v757
    %v762 = vadd.f32 %v744, %v756
    %v763 = vadd.f32 %v745, %v758
    %v764 = vadd.f32 %v746, %v757
    %765 = vrot.lane.b32.xlu0 %v706, 124
    %v766 = vpop.permute.xlu0 %765
    %767 = vrot.lane.b32.xlu0 %v708, 124
    %v768 = vpop.permute.xlu0 %767
    %v769 = vstv %s67
    %v770 = vmul.f32 %v769, %v766
    %v771 = vmul.f32 %v769, %v768
    %v774 = vrot.slane %v770, 3
    %v775 = vrot.slane %v771, 3
    %v776 = vsel %vm463, %v774, %v775
    %v780 = vadd.f32 %v762, %v774
    %v781 = vadd.f32 %v763, %v776
    %v782 = vadd.f32 %v764, %v775
    %783 = vrot.lane.b32.xlu0 %v706, 123
    %v784 = vpop.permute.xlu0 %783
    %785 = vrot.lane.b32.xlu0 %v708, 123
    %v786 = vpop.permute.xlu0 %785
    %v787 = vstv %s68
    %v788 = vmul.f32 %v787, %v784
    %v789 = vmul.f32 %v787, %v786
    %v792 = vrot.slane %v788, 3
    %v793 = vrot.slane %v789, 3
    %v794 = vsel %vm463, %v792, %v793
    %v798 = vadd.f32 %v780, %v792
    %v799 = vadd.f32 %v781, %v794
    %v800 = vadd.f32 %v782, %v793
    %801 = vrot.lane.b32.xlu0 %v706, 122
    %v802 = vpop.permute.xlu0 %801
    %803 = vrot.lane.b32.xlu0 %v708, 122
    %v804 = vpop.permute.xlu0 %803
    %v805 = vstv %s69
    %v806 = vmul.f32 %v805, %v802
    %v807 = vmul.f32 %v805, %v804
    %v810 = vrot.slane %v806, 3
    %v811 = vrot.slane %v807, 3
    %v812 = vsel %vm463, %v810, %v811
    %v816 = vadd.f32 %v798, %v810
    %v817 = vadd.f32 %v799, %v812
    %v818 = vadd.f32 %v800, %v811
    %v819 = vstv %s70
    %v820 = vmul.f32 %v819, %v141
    %v821 = vmul.f32 %v819, %v144
    %v822 = vmul.f32 %v819, %v147
    %v823 = vrot.slane %v141, 6
    %v824 = vrot.slane %v144, 6
    %v825 = vsel %vm359, %v823, %v824
    %v826 = vrot.slane %v147, 6
    %v827 = vsel %vm359, %v824, %v826
    %830 = vrot.lane.b32.xlu0 %v825, 127
    %v831 = vpop.permute.xlu0 %830
    %832 = vrot.lane.b32.xlu0 %v827, 127
    %v833 = vpop.permute.xlu0 %832
    %v834 = vstv %s71
    %v835 = vmul.f32 %v834, %v831
    %v836 = vmul.f32 %v834, %v833
    %v839 = vrot.slane %v835, 2
    %v840 = vrot.slane %v836, 2
    %v841 = vsel %vm342, %v839, %v840
    %v845 = vadd.f32 %v820, %v839
    %v846 = vadd.f32 %v821, %v841
    %v847 = vadd.f32 %v822, %v840
    %848 = vrot.lane.b32.xlu0 %v825, 126
    %v849 = vpop.permute.xlu0 %848
    %850 = vrot.lane.b32.xlu0 %v827, 126
    %v851 = vpop.permute.xlu0 %850
    %v852 = vstv %s72
    %v853 = vmul.f32 %v852, %v849
    %v854 = vmul.f32 %v852, %v851
    %v857 = vrot.slane %v853, 2
    %v858 = vrot.slane %v854, 2
    %v859 = vsel %vm342, %v857, %v858
    %v863 = vadd.f32 %v845, %v857
    %v864 = vadd.f32 %v846, %v859
    %v865 = vadd.f32 %v847, %v858
    %866 = vrot.lane.b32.xlu0 %v825, 125
    %v867 = vpop.permute.xlu0 %866
    %868 = vrot.lane.b32.xlu0 %v827, 125
    %v869 = vpop.permute.xlu0 %868
    %v870 = vstv %s73
    %v871 = vmul.f32 %v870, %v867
    %v872 = vmul.f32 %v870, %v869
    %v875 = vrot.slane %v871, 2
    %v876 = vrot.slane %v872, 2
    %v877 = vsel %vm342, %v875, %v876
    %v881 = vadd.f32 %v863, %v875
    %v882 = vadd.f32 %v864, %v877
    %v883 = vadd.f32 %v865, %v876
    %884 = vrot.lane.b32.xlu0 %v825, 124
    %v885 = vpop.permute.xlu0 %884
    %886 = vrot.lane.b32.xlu0 %v827, 124
    %v887 = vpop.permute.xlu0 %886
    %v888 = vstv %s74
    %v889 = vmul.f32 %v888, %v885
    %v890 = vmul.f32 %v888, %v887
    %v893 = vrot.slane %v889, 2
    %v894 = vrot.slane %v890, 2
    %v895 = vsel %vm342, %v893, %v894
    %v899 = vadd.f32 %v881, %v893
    %v900 = vadd.f32 %v882, %v895
    %v901 = vadd.f32 %v883, %v894
    %902 = vrot.lane.b32.xlu0 %v825, 123
    %v903 = vpop.permute.xlu0 %902
    %904 = vrot.lane.b32.xlu0 %v827, 123
    %v905 = vpop.permute.xlu0 %904
    %v906 = vstv %s75
    %v907 = vmul.f32 %v906, %v903
    %v908 = vmul.f32 %v906, %v905
    %v911 = vrot.slane %v907, 2
    %v912 = vrot.slane %v908, 2
    %v913 = vsel %vm342, %v911, %v912
    %v917 = vadd.f32 %v899, %v911
    %v918 = vadd.f32 %v900, %v913
    %v919 = vadd.f32 %v901, %v912
    %920 = vrot.lane.b32.xlu0 %v825, 122
    %v921 = vpop.permute.xlu0 %920
    %922 = vrot.lane.b32.xlu0 %v827, 122
    %v923 = vpop.permute.xlu0 %922
    %v924 = vstv %s76
    %v925 = vmul.f32 %v924, %v921
    %v926 = vmul.f32 %v924, %v923
    %v929 = vrot.slane %v925, 2
    %v930 = vrot.slane %v926, 2
    %v931 = vsel %vm342, %v929, %v930
    %v935 = vadd.f32 %v917, %v929
    %v936 = vadd.f32 %v918, %v931
    %v937 = vadd.f32 %v919, %v930
    %v938 = vstv %s77
    %v939 = vmul.f32 %v938, %v150
    %v940 = vmul.f32 %v938, %v153
    %941 = vrot.lane.b32.xlu0 %v150, 127
    %v942 = vpop.permute.xlu0 %941
    %943 = vrot.lane.b32.xlu0 %v153, 127
    %v944 = vpop.permute.xlu0 %943
    %v945 = vstv %s78
    %v946 = vmul.f32 %v945, %v942
    %v947 = vmul.f32 %v945, %v944
    %v948 = vadd.f32 %v939, %v946
    %v949 = vadd.f32 %v940, %v947
    %950 = vrot.lane.b32.xlu0 %v150, 126
    %v951 = vpop.permute.xlu0 %950
    %952 = vrot.lane.b32.xlu0 %v153, 126
    %v953 = vpop.permute.xlu0 %952
    %v954 = vstv %s79
    %v955 = vmul.f32 %v954, %v951
    %v956 = vmul.f32 %v954, %v953
    %v957 = vadd.f32 %v948, %v955
    %v958 = vadd.f32 %v949, %v956
    %959 = vrot.lane.b32.xlu0 %v150, 125
    %v960 = vpop.permute.xlu0 %959
    %961 = vrot.lane.b32.xlu0 %v153, 125
    %v962 = vpop.permute.xlu0 %961
    %v963 = vstv %s80
    %v964 = vmul.f32 %v963, %v960
    %v965 = vmul.f32 %v963, %v962
    %v966 = vadd.f32 %v957, %v964
    %v967 = vadd.f32 %v958, %v965
    %968 = vrot.lane.b32.xlu0 %v150, 124
    %v969 = vpop.permute.xlu0 %968
    %970 = vrot.lane.b32.xlu0 %v153, 124
    %v971 = vpop.permute.xlu0 %970
    %v972 = vstv %s81
    %v973 = vmul.f32 %v972, %v969
    %v974 = vmul.f32 %v972, %v971
    %v975 = vadd.f32 %v966, %v973
    %v976 = vadd.f32 %v967, %v974
    %977 = vrot.lane.b32.xlu0 %v150, 123
    %v978 = vpop.permute.xlu0 %977
    %979 = vrot.lane.b32.xlu0 %v153, 123
    %v980 = vpop.permute.xlu0 %979
    %v981 = vstv %s82
    %v982 = vmul.f32 %v981, %v978
    %v983 = vmul.f32 %v981, %v980
    %v984 = vadd.f32 %v975, %v982
    %v985 = vadd.f32 %v976, %v983
    %986 = vrot.lane.b32.xlu0 %v150, 122
    %v987 = vpop.permute.xlu0 %986
    %988 = vrot.lane.b32.xlu0 %v153, 122
    %v989 = vpop.permute.xlu0 %988
    %v990 = vstv %s83
    %v991 = vmul.f32 %v990, %v987
    %v992 = vmul.f32 %v990, %v989
    %v993 = vadd.f32 %v984, %v991
    %v994 = vadd.f32 %v985, %v992
    %v995 = vstv %s84
    %v996 = vmul.f32 %v995, %v150
    %v997 = vmul.f32 %v995, %v153
    %v998 = vmul.f32 %v995, %v156
    %v1002 = vrot.slane %v150, 1
    %v1003 = vrot.slane %v153, 1
    %v1004 = vsel %vm221, %v1002, %v1003
    %v1005 = vrot.slane %v156, 1
    %v1006 = vsel %vm221, %v1003, %v1005
    %1009 = vrot.lane.b32.xlu0 %v1004, 127
    %v1010 = vpop.permute.xlu0 %1009
    %1011 = vrot.lane.b32.xlu0 %v1006, 127
    %v1012 = vpop.permute.xlu0 %1011
    %v1013 = vstv %s85
    %v1014 = vmul.f32 %v1013, %v1010
    %v1015 = vmul.f32 %v1013, %v1012
    %v1018 = vrot.slane %v1014, 7
    %v1019 = vrot.slane %v1015, 7
    %v1020 = vsel %vm238, %v1018, %v1019
    %v1024 = vadd.f32 %v996, %v1018
    %v1025 = vadd.f32 %v997, %v1020
    %v1026 = vadd.f32 %v998, %v1019
    %1027 = vrot.lane.b32.xlu0 %v1004, 126
    %v1028 = vpop.permute.xlu0 %1027
    %1029 = vrot.lane.b32.xlu0 %v1006, 126
    %v1030 = vpop.permute.xlu0 %1029
    %v1031 = vstv %s86
    %v1032 = vmul.f32 %v1031, %v1028
    %v1033 = vmul.f32 %v1031, %v1030
    %v1036 = vrot.slane %v1032, 7
    %v1037 = vrot.slane %v1033, 7
    %v1038 = vsel %vm238, %v1036, %v1037
    %v1042 = vadd.f32 %v1024, %v1036
    %v1043 = vadd.f32 %v1025, %v1038
    %v1044 = vadd.f32 %v1026, %v1037
    %1045 = vrot.lane.b32.xlu0 %v1004, 125
    %v1046 = vpop.permute.xlu0 %1045
    %1047 = vrot.lane.b32.xlu0 %v1006, 125
    %v1048 = vpop.permute.xlu0 %1047
    %v1049 = vstv %s87
    %v1050 = vmul.f32 %v1049, %v1046
    %v1051 = vmul.f32 %v1049, %v1048
    %v1054 = vrot.slane %v1050, 7
    %v1055 = vrot.slane %v1051, 7
    %v1056 = vsel %vm238, %v1054, %v1055
    %v1060 = vadd.f32 %v1042, %v1054
    %v1061 = vadd.f32 %v1043, %v1056
    %v1062 = vadd.f32 %v1044, %v1055
    %1063 = vrot.lane.b32.xlu0 %v1004, 124
    %v1064 = vpop.permute.xlu0 %1063
    %1065 = vrot.lane.b32.xlu0 %v1006, 124
    %v1066 = vpop.permute.xlu0 %1065
    %v1067 = vstv %s88
    %v1068 = vmul.f32 %v1067, %v1064
    %v1069 = vmul.f32 %v1067, %v1066
    %v1072 = vrot.slane %v1068, 7
    %v1073 = vrot.slane %v1069, 7
    %v1074 = vsel %vm238, %v1072, %v1073
    %v1078 = vadd.f32 %v1060, %v1072
    %v1079 = vadd.f32 %v1061, %v1074
    %v1080 = vadd.f32 %v1062, %v1073
    %1081 = vrot.lane.b32.xlu0 %v1004, 123
    %v1082 = vpop.permute.xlu0 %1081
    %1083 = vrot.lane.b32.xlu0 %v1006, 123
    %v1084 = vpop.permute.xlu0 %1083
    %v1085 = vstv %s89
    %v1086 = vmul.f32 %v1085, %v1082
    %v1087 = vmul.f32 %v1085, %v1084
    %v1090 = vrot.slane %v1086, 7
    %v1091 = vrot.slane %v1087, 7
    %v1092 = vsel %vm238, %v1090, %v1091
    %v1096 = vadd.f32 %v1078, %v1090
    %v1097 = vadd.f32 %v1079, %v1092
    %v1098 = vadd.f32 %v1080, %v1091
    %1099 = vrot.lane.b32.xlu0 %v1004, 122
    %v1100 = vpop.permute.xlu0 %1099
    %1101 = vrot.lane.b32.xlu0 %v1006, 122
    %v1102 = vpop.permute.xlu0 %1101
    %v1103 = vstv %s90
    %v1104 = vmul.f32 %v1103, %v1100
    %v1105 = vmul.f32 %v1103, %v1102
    %v1108 = vrot.slane %v1104, 7
    %v1109 = vrot.slane %v1105, 7
    %v1110 = vsel %vm238, %v1108, %v1109
    %v1114 = vadd.f32 %v1096, %v1108
    %v1115 = vadd.f32 %v1097, %v1110
    %v1116 = vadd.f32 %v1098, %v1109
    %v1117 = vstv %s91
    %v1118 = vmul.f32 %v1117, %v150
    %v1119 = vmul.f32 %v1117, %v153
    %v1120 = vmul.f32 %v1117, %v156
    %v1121 = vrot.slane %v150, 2
    %v1122 = vrot.slane %v153, 2
    %v1123 = vsel %vm342, %v1121, %v1122
    %v1124 = vrot.slane %v156, 2
    %v1125 = vsel %vm342, %v1122, %v1124
    %1128 = vrot.lane.b32.xlu0 %v1123, 127
    %v1129 = vpop.permute.xlu0 %1128
    %1130 = vrot.lane.b32.xlu0 %v1125, 127
    %v1131 = vpop.permute.xlu0 %1130
    %v1132 = vstv %s92
    %v1133 = vmul.f32 %v1132, %v1129
    %v1134 = vmul.f32 %v1132, %v1131
    %v1137 = vrot.slane %v1133, 6
    %v1138 = vrot.slane %v1134, 6
    %v1139 = vsel %vm359, %v1137, %v1138
    %v1143 = vadd.f32 %v1118, %v1137
    %v1144 = vadd.f32 %v1119, %v1139
    %v1145 = vadd.f32 %v1120, %v1138
    %1146 = vrot.lane.b32.xlu0 %v1123, 126
    %v1147 = vpop.permute.xlu0 %1146
    %1148 = vrot.lane.b32.xlu0 %v1125, 126
    %v1149 = vpop.permute.xlu0 %1148
    %v1150 = vstv %s93
    %v1151 = vmul.f32 %v1150, %v1147
    %v1152 = vmul.f32 %v1150, %v1149
    %v1155 = vrot.slane %v1151, 6
    %v1156 = vrot.slane %v1152, 6
    %v1157 = vsel %vm359, %v1155, %v1156
    %v1161 = vadd.f32 %v1143, %v1155
    %v1162 = vadd.f32 %v1144, %v1157
    %v1163 = vadd.f32 %v1145, %v1156
    %1164 = vrot.lane.b32.xlu0 %v1123, 125
    %v1165 = vpop.permute.xlu0 %1164
    %1166 = vrot.lane.b32.xlu0 %v1125, 125
    %v1167 = vpop.permute.xlu0 %1166
    %v1168 = vstv %s94
    %v1169 = vmul.f32 %v1168, %v1165
    %v1170 = vmul.f32 %v1168, %v1167
    %v1173 = vrot.slane %v1169, 6
    %v1174 = vrot.slane %v1170, 6
    %v1175 = vsel %vm359, %v1173, %v1174
    %v1179 = vadd.f32 %v1161, %v1173
    %v1180 = vadd.f32 %v1162, %v1175
    %v1181 = vadd.f32 %v1163, %v1174
    %1182 = vrot.lane.b32.xlu0 %v1123, 124
    %v1183 = vpop.permute.xlu0 %1182
    %1184 = vrot.lane.b32.xlu0 %v1125, 124
    %v1185 = vpop.permute.xlu0 %1184
    %v1186 = vstv %s95
    %v1187 = vmul.f32 %v1186, %v1183
    %v1188 = vmul.f32 %v1186, %v1185
    %v1191 = vrot.slane %v1187, 6
    %v1192 = vrot.slane %v1188, 6
    %v1193 = vsel %vm359, %v1191, %v1192
    %v1197 = vadd.f32 %v1179, %v1191
    %v1198 = vadd.f32 %v1180, %v1193
    %v1199 = vadd.f32 %v1181, %v1192
    %1200 = vrot.lane.b32.xlu0 %v1123, 123
    %v1201 = vpop.permute.xlu0 %1200
    %1202 = vrot.lane.b32.xlu0 %v1125, 123
    %v1203 = vpop.permute.xlu0 %1202
    %v1204 = vstv %s96
    %v1205 = vmul.f32 %v1204, %v1201
    %v1206 = vmul.f32 %v1204, %v1203
    %v1209 = vrot.slane %v1205, 6
    %v1210 = vrot.slane %v1206, 6
    %v1211 = vsel %vm359, %v1209, %v1210
    %v1215 = vadd.f32 %v1197, %v1209
    %v1216 = vadd.f32 %v1198, %v1211
    %v1217 = vadd.f32 %v1199, %v1210
    %1218 = vrot.lane.b32.xlu0 %v1123, 122
    %v1219 = vpop.permute.xlu0 %1218
    %1220 = vrot.lane.b32.xlu0 %v1125, 122
    %v1221 = vpop.permute.xlu0 %1220
    %v1222 = vstv %s97
    %v1223 = vmul.f32 %v1222, %v1219
    %v1224 = vmul.f32 %v1222, %v1221
    %v1227 = vrot.slane %v1223, 6
    %v1228 = vrot.slane %v1224, 6
    %v1229 = vsel %vm359, %v1227, %v1228
    %v1233 = vadd.f32 %v1215, %v1227
    %v1234 = vadd.f32 %v1216, %v1229
    %v1235 = vadd.f32 %v1217, %v1228
    %v1236 = vstv %s98
    %v1237 = vmul.f32 %v1236, %v150
    %v1238 = vmul.f32 %v1236, %v153
    %v1239 = vmul.f32 %v1236, %v156
    %v1240 = vrot.slane %v150, 3
    %v1241 = vrot.slane %v153, 3
    %v1242 = vsel %vm463, %v1240, %v1241
    %v1243 = vrot.slane %v156, 3
    %v1244 = vsel %vm463, %v1241, %v1243
    %1247 = vrot.lane.b32.xlu0 %v1242, 127
    %v1248 = vpop.permute.xlu0 %1247
    %1249 = vrot.lane.b32.xlu0 %v1244, 127
    %v1250 = vpop.permute.xlu0 %1249
    %v1251 = vstv %s99
    %v1252 = vmul.f32 %v1251, %v1248
    %v1253 = vmul.f32 %v1251, %v1250
    %v1256 = vrot.slane %v1252, 5
    %v1257 = vrot.slane %v1253, 5
    %v1258 = vsel %vm480, %v1256, %v1257
    %v1262 = vadd.f32 %v1237, %v1256
    %v1263 = vadd.f32 %v1238, %v1258
    %v1264 = vadd.f32 %v1239, %v1257
    %1265 = vrot.lane.b32.xlu0 %v1242, 126
    %v1266 = vpop.permute.xlu0 %1265
    %1267 = vrot.lane.b32.xlu0 %v1244, 126
    %v1268 = vpop.permute.xlu0 %1267
    %v1269 = vstv %s100
    %v1270 = vmul.f32 %v1269, %v1266
    %v1271 = vmul.f32 %v1269, %v1268
    %v1274 = vrot.slane %v1270, 5
    %v1275 = vrot.slane %v1271, 5
    %v1276 = vsel %vm480, %v1274, %v1275
    %v1280 = vadd.f32 %v1262, %v1274
    %v1281 = vadd.f32 %v1263, %v1276
    %v1282 = vadd.f32 %v1264, %v1275
    %1283 = vrot.lane.b32.xlu0 %v1242, 125
    %v1284 = vpop.permute.xlu0 %1283
    %1285 = vrot.lane.b32.xlu0 %v1244, 125
    %v1286 = vpop.permute.xlu0 %1285
    %v1287 = vstv %s101
    %v1288 = vmul.f32 %v1287, %v1284
    %v1289 = vmul.f32 %v1287, %v1286
    %v1292 = vrot.slane %v1288, 5
    %v1293 = vrot.slane %v1289, 5
    %v1294 = vsel %vm480, %v1292, %v1293
    %v1298 = vadd.f32 %v1280, %v1292
    %v1299 = vadd.f32 %v1281, %v1294
    %v1300 = vadd.f32 %v1282, %v1293
    %1301 = vrot.lane.b32.xlu0 %v1242, 124
    %v1302 = vpop.permute.xlu0 %1301
    %1303 = vrot.lane.b32.xlu0 %v1244, 124
    %v1304 = vpop.permute.xlu0 %1303
    %v1305 = vstv %s102
    %v1306 = vmul.f32 %v1305, %v1302
    %v1307 = vmul.f32 %v1305, %v1304
    %v1310 = vrot.slane %v1306, 5
    %v1311 = vrot.slane %v1307, 5
    %v1312 = vsel %vm480, %v1310, %v1311
    %v1316 = vadd.f32 %v1298, %v1310
    %v1317 = vadd.f32 %v1299, %v1312
    %v1318 = vadd.f32 %v1300, %v1311
    %1319 = vrot.lane.b32.xlu0 %v1242, 123
    %v1320 = vpop.permute.xlu0 %1319
    %1321 = vrot.lane.b32.xlu0 %v1244, 123
    %v1322 = vpop.permute.xlu0 %1321
    %v1323 = vstv %s103
    %v1324 = vmul.f32 %v1323, %v1320
    %v1325 = vmul.f32 %v1323, %v1322
    %v1328 = vrot.slane %v1324, 5
    %v1329 = vrot.slane %v1325, 5
    %v1330 = vsel %vm480, %v1328, %v1329
    %v1334 = vadd.f32 %v1316, %v1328
    %v1335 = vadd.f32 %v1317, %v1330
    %v1336 = vadd.f32 %v1318, %v1329
    %1337 = vrot.lane.b32.xlu0 %v1242, 122
    %v1338 = vpop.permute.xlu0 %1337
    %1339 = vrot.lane.b32.xlu0 %v1244, 122
    %v1340 = vpop.permute.xlu0 %1339
    %v1341 = vstv %s104
    %v1342 = vmul.f32 %v1341, %v1338
    %v1343 = vmul.f32 %v1341, %v1340
    %v1346 = vrot.slane %v1342, 5
    %v1347 = vrot.slane %v1343, 5
    %v1348 = vsel %vm480, %v1346, %v1347
    %v1352 = vadd.f32 %v1334, %v1346
    %v1353 = vadd.f32 %v1335, %v1348
    %v1354 = vadd.f32 %v1336, %v1347
    %v1355 = vstv %s105
    %v1356 = vmul.f32 %v1355, %v150
    %v1357 = vmul.f32 %v1355, %v153
    %v1358 = vmul.f32 %v1355, %v156
    %v1359 = vrot.slane %v150, 4
    %v1360 = vrot.slane %v153, 4
    %v1361 = vsel %vm584, %v1359, %v1360
    %v1362 = vrot.slane %v156, 4
    %v1363 = vsel %vm584, %v1360, %v1362
    %1366 = vrot.lane.b32.xlu0 %v1361, 127
    %v1367 = vpop.permute.xlu0 %1366
    %1368 = vrot.lane.b32.xlu0 %v1363, 127
    %v1369 = vpop.permute.xlu0 %1368
    %v1370 = vstv %s106
    %v1371 = vmul.f32 %v1370, %v1367
    %v1372 = vmul.f32 %v1370, %v1369
    %v1375 = vrot.slane %v1371, 4
    %v1376 = vrot.slane %v1372, 4
    %v1377 = vsel %vm584, %v1375, %v1376
    %v1381 = vadd.f32 %v1356, %v1375
    %v1382 = vadd.f32 %v1357, %v1377
    %v1383 = vadd.f32 %v1358, %v1376
    %1384 = vrot.lane.b32.xlu0 %v1361, 126
    %v1385 = vpop.permute.xlu0 %1384
    %1386 = vrot.lane.b32.xlu0 %v1363, 126
    %v1387 = vpop.permute.xlu0 %1386
    %v1388 = vstv %s107
    %v1389 = vmul.f32 %v1388, %v1385
    %v1390 = vmul.f32 %v1388, %v1387
    %v1393 = vrot.slane %v1389, 4
    %v1394 = vrot.slane %v1390, 4
    %v1395 = vsel %vm584, %v1393, %v1394
    %v1399 = vadd.f32 %v1381, %v1393
    %v1400 = vadd.f32 %v1382, %v1395
    %v1401 = vadd.f32 %v1383, %v1394
    %1402 = vrot.lane.b32.xlu0 %v1361, 125
    %v1403 = vpop.permute.xlu0 %1402
    %1404 = vrot.lane.b32.xlu0 %v1363, 125
    %v1405 = vpop.permute.xlu0 %1404
    %v1406 = vstv %s108
    %v1407 = vmul.f32 %v1406, %v1403
    %v1408 = vmul.f32 %v1406, %v1405
    %v1411 = vrot.slane %v1407, 4
    %v1412 = vrot.slane %v1408, 4
    %v1413 = vsel %vm584, %v1411, %v1412
    %v1417 = vadd.f32 %v1399, %v1411
    %v1418 = vadd.f32 %v1400, %v1413
    %v1419 = vadd.f32 %v1401, %v1412
    %1420 = vrot.lane.b32.xlu0 %v1361, 124
    %v1421 = vpop.permute.xlu0 %1420
    %1422 = vrot.lane.b32.xlu0 %v1363, 124
    %v1423 = vpop.permute.xlu0 %1422
    %v1424 = vstv %s109
    %v1425 = vmul.f32 %v1424, %v1421
    %v1426 = vmul.f32 %v1424, %v1423
    %v1429 = vrot.slane %v1425, 4
    %v1430 = vrot.slane %v1426, 4
    %v1431 = vsel %vm584, %v1429, %v1430
    %v1435 = vadd.f32 %v1417, %v1429
    %v1436 = vadd.f32 %v1418, %v1431
    %v1437 = vadd.f32 %v1419, %v1430
    %1438 = vrot.lane.b32.xlu0 %v1361, 123
    %v1439 = vpop.permute.xlu0 %1438
    %1440 = vrot.lane.b32.xlu0 %v1363, 123
    %v1441 = vpop.permute.xlu0 %1440
    %v1442 = vstv %s110
    %v1443 = vmul.f32 %v1442, %v1439
    %v1444 = vmul.f32 %v1442, %v1441
    %v1447 = vrot.slane %v1443, 4
    %v1448 = vrot.slane %v1444, 4
    %v1449 = vsel %vm584, %v1447, %v1448
    %v1453 = vadd.f32 %v1435, %v1447
    %v1454 = vadd.f32 %v1436, %v1449
    %v1455 = vadd.f32 %v1437, %v1448
    %1456 = vrot.lane.b32.xlu0 %v1361, 122
    %v1457 = vpop.permute.xlu0 %1456
    %1458 = vrot.lane.b32.xlu0 %v1363, 122
    %v1459 = vpop.permute.xlu0 %1458
    %v1460 = vstv %s111
    %v1461 = vmul.f32 %v1460, %v1457
    %v1462 = vmul.f32 %v1460, %v1459
    %v1465 = vrot.slane %v1461, 4
    %v1466 = vrot.slane %v1462, 4
    %v1467 = vsel %vm584, %v1465, %v1466
    %v1471 = vadd.f32 %v1453, %v1465
    %v1472 = vadd.f32 %v1454, %v1467
    %v1473 = vadd.f32 %v1455, %v1466
    %v1474 = vstv %s112
    %v1475 = vmul.f32 %v1474, %v150
    %v1476 = vmul.f32 %v1474, %v153
    %v1477 = vmul.f32 %v1474, %v156
    %v1478 = vrot.slane %v150, 5
    %v1479 = vrot.slane %v153, 5
    %v1480 = vsel %vm480, %v1478, %v1479
    %v1481 = vrot.slane %v156, 5
    %v1482 = vsel %vm480, %v1479, %v1481
    %1485 = vrot.lane.b32.xlu0 %v1480, 127
    %v1486 = vpop.permute.xlu0 %1485
    %1487 = vrot.lane.b32.xlu0 %v1482, 127
    %v1488 = vpop.permute.xlu0 %1487
    %v1489 = vstv %s113
    %v1490 = vmul.f32 %v1489, %v1486
    %v1491 = vmul.f32 %v1489, %v1488
    %v1494 = vrot.slane %v1490, 3
    %v1495 = vrot.slane %v1491, 3
    %v1496 = vsel %vm463, %v1494, %v1495
    %v1500 = vadd.f32 %v1475, %v1494
    %v1501 = vadd.f32 %v1476, %v1496
    %v1502 = vadd.f32 %v1477, %v1495
    %1503 = vrot.lane.b32.xlu0 %v1480, 126
    %v1504 = vpop.permute.xlu0 %1503
    %1505 = vrot.lane.b32.xlu0 %v1482, 126
    %v1506 = vpop.permute.xlu0 %1505
    %v1507 = vstv %s114
    %v1508 = vmul.f32 %v1507, %v1504
    %v1509 = vmul.f32 %v1507, %v1506
    %v1512 = vrot.slane %v1508, 3
    %v1513 = vrot.slane %v1509, 3
    %v1514 = vsel %vm463, %v1512, %v1513
    %v1518 = vadd.f32 %v1500, %v1512
    %v1519 = vadd.f32 %v1501, %v1514
    %v1520 = vadd.f32 %v1502, %v1513
    %1521 = vrot.lane.b32.xlu0 %v1480, 125
    %v1522 = vpop.permute.xlu0 %1521
    %1523 = vrot.lane.b32.xlu0 %v1482, 125
    %v1524 = vpop.permute.xlu0 %1523
    %v1525 = vstv %s115
    %v1526 = vmul.f32 %v1525, %v1522
    %v1527 = vmul.f32 %v1525, %v1524
    %v1530 = vrot.slane %v1526, 3
    %v1531 = vrot.slane %v1527, 3
    %v1532 = vsel %vm463, %v1530, %v1531
    %v1536 = vadd.f32 %v1518, %v1530
    %v1537 = vadd.f32 %v1519, %v1532
    %v1538 = vadd.f32 %v1520, %v1531
    %1539 = vrot.lane.b32.xlu0 %v1480, 124
    %v1540 = vpop.permute.xlu0 %1539
    %1541 = vrot.lane.b32.xlu0 %v1482, 124
    %v1542 = vpop.permute.xlu0 %1541
    %v1543 = vstv %s116
    %v1544 = vmul.f32 %v1543, %v1540
    %v1545 = vmul.f32 %v1543, %v1542
    %v1548 = vrot.slane %v1544, 3
    %v1549 = vrot.slane %v1545, 3
    %v1550 = vsel %vm463, %v1548, %v1549
    %v1554 = vadd.f32 %v1536, %v1548
    %v1555 = vadd.f32 %v1537, %v1550
    %v1556 = vadd.f32 %v1538, %v1549
    %1557 = vrot.lane.b32.xlu0 %v1480, 123
    %v1558 = vpop.permute.xlu0 %1557
    %1559 = vrot.lane.b32.xlu0 %v1482, 123
    %v1560 = vpop.permute.xlu0 %1559
    %v1561 = vstv %s117
    %v1562 = vmul.f32 %v1561, %v1558
    %v1563 = vmul.f32 %v1561, %v1560
    %v1566 = vrot.slane %v1562, 3
    %v1567 = vrot.slane %v1563, 3
    %v1568 = vsel %vm463, %v1566, %v1567
    %v1572 = vadd.f32 %v1554, %v1566
    %v1573 = vadd.f32 %v1555, %v1568
    %v1574 = vadd.f32 %v1556, %v1567
    %1575 = vrot.lane.b32.xlu0 %v1480, 122
    %v1576 = vpop.permute.xlu0 %1575
    %1577 = vrot.lane.b32.xlu0 %v1482, 122
    %v1578 = vpop.permute.xlu0 %1577
    %v1579 = vstv %s118
    %v1580 = vmul.f32 %v1579, %v1576
    %v1581 = vmul.f32 %v1579, %v1578
    %v1584 = vrot.slane %v1580, 3
    %v1585 = vrot.slane %v1581, 3
    %v1586 = vsel %vm463, %v1584, %v1585
    %v1590 = vadd.f32 %v1572, %v1584
    %v1591 = vadd.f32 %v1573, %v1586
    %v1592 = vadd.f32 %v1574, %v1585
    %v1593 = vstv %s119
    %v1594 = vmul.f32 %v1593, %v150
    %v1595 = vmul.f32 %v1593, %v153
    %v1596 = vmul.f32 %v1593, %v156
    %v1597 = vrot.slane %v150, 6
    %v1598 = vrot.slane %v153, 6
    %v1599 = vsel %vm359, %v1597, %v1598
    %v1600 = vrot.slane %v156, 6
    %v1601 = vsel %vm359, %v1598, %v1600
    %1604 = vrot.lane.b32.xlu0 %v1599, 127
    %v1605 = vpop.permute.xlu0 %1604
    %1606 = vrot.lane.b32.xlu0 %v1601, 127
    %v1607 = vpop.permute.xlu0 %1606
    %v1608 = vstv %s120
    %v1609 = vmul.f32 %v1608, %v1605
    %v1610 = vmul.f32 %v1608, %v1607
    %v1613 = vrot.slane %v1609, 2
    %v1614 = vrot.slane %v1610, 2
    %v1615 = vsel %vm342, %v1613, %v1614
    %v1619 = vadd.f32 %v1594, %v1613
    %v1620 = vadd.f32 %v1595, %v1615
    %v1621 = vadd.f32 %v1596, %v1614
    %1622 = vrot.lane.b32.xlu0 %v1599, 126
    %v1623 = vpop.permute.xlu0 %1622
    %1624 = vrot.lane.b32.xlu0 %v1601, 126
    %v1625 = vpop.permute.xlu0 %1624
    %v1626 = vstv %s121
    %v1627 = vmul.f32 %v1626, %v1623
    %v1628 = vmul.f32 %v1626, %v1625
    %v1631 = vrot.slane %v1627, 2
    %v1632 = vrot.slane %v1628, 2
    %v1633 = vsel %vm342, %v1631, %v1632
    %v1637 = vadd.f32 %v1619, %v1631
    %v1638 = vadd.f32 %v1620, %v1633
    %v1639 = vadd.f32 %v1621, %v1632
    %1640 = vrot.lane.b32.xlu0 %v1599, 125
    %v1641 = vpop.permute.xlu0 %1640
    %1642 = vrot.lane.b32.xlu0 %v1601, 125
    %v1643 = vpop.permute.xlu0 %1642
    %v1644 = vstv %s122
    %v1645 = vmul.f32 %v1644, %v1641
    %v1646 = vmul.f32 %v1644, %v1643
    %v1649 = vrot.slane %v1645, 2
    %v1650 = vrot.slane %v1646, 2
    %v1651 = vsel %vm342, %v1649, %v1650
    %v1655 = vadd.f32 %v1637, %v1649
    %v1656 = vadd.f32 %v1638, %v1651
    %v1657 = vadd.f32 %v1639, %v1650
    %1658 = vrot.lane.b32.xlu0 %v1599, 124
    %v1659 = vpop.permute.xlu0 %1658
    %1660 = vrot.lane.b32.xlu0 %v1601, 124
    %v1661 = vpop.permute.xlu0 %1660
    %v1662 = vstv %s123
    %v1663 = vmul.f32 %v1662, %v1659
    %v1664 = vmul.f32 %v1662, %v1661
    %v1667 = vrot.slane %v1663, 2
    %v1668 = vrot.slane %v1664, 2
    %v1669 = vsel %vm342, %v1667, %v1668
    %v1673 = vadd.f32 %v1655, %v1667
    %v1674 = vadd.f32 %v1656, %v1669
    %v1675 = vadd.f32 %v1657, %v1668
    %1676 = vrot.lane.b32.xlu0 %v1599, 123
    %v1677 = vpop.permute.xlu0 %1676
    %1678 = vrot.lane.b32.xlu0 %v1601, 123
    %v1679 = vpop.permute.xlu0 %1678
    %v1680 = vstv %s124
    %v1681 = vmul.f32 %v1680, %v1677
    %v1682 = vmul.f32 %v1680, %v1679
    %v1685 = vrot.slane %v1681, 2
    %v1686 = vrot.slane %v1682, 2
    %v1687 = vsel %vm342, %v1685, %v1686
    %v1691 = vadd.f32 %v1673, %v1685
    %v1692 = vadd.f32 %v1674, %v1687
    %v1693 = vadd.f32 %v1675, %v1686
    %1694 = vrot.lane.b32.xlu0 %v1599, 122
    %v1695 = vpop.permute.xlu0 %1694
    %1696 = vrot.lane.b32.xlu0 %v1601, 122
    %v1697 = vpop.permute.xlu0 %1696
    %v1698 = vstv %s125
    %v1699 = vmul.f32 %v1698, %v1695
    %v1700 = vmul.f32 %v1698, %v1697
    %v1703 = vrot.slane %v1699, 2
    %v1704 = vrot.slane %v1700, 2
    %v1705 = vsel %vm342, %v1703, %v1704
    %v1709 = vadd.f32 %v1691, %v1703
    %v1710 = vadd.f32 %v1692, %v1705
    %v1711 = vadd.f32 %v1693, %v1704
    %v1715 = vrot.slane %v335, 1
    %v1716 = vrot.slane %v336, 1
    %v1717 = vsel %vm221, %v1715, %v1716
    %v1718 = vrot.slane %v337, 1
    %v1719 = vsel %vm221, %v1716, %v1718
    %v1722 = vadd.f32 %v212, %v1717
    %v1723 = vadd.f32 %v213, %v1719
    %v1727 = vrot.slane %v577, 1
    %v1728 = vrot.slane %v578, 1
    %v1729 = vsel %vm221, %v1727, %v1728
    %v1730 = vrot.slane %v579, 1
    %v1731 = vsel %vm221, %v1728, %v1730
    %v1735 = vadd.f32 %v456, %v1729
    %v1736 = vadd.f32 %v457, %v1731
    %v1737 = vadd.f32 %v458, %v1730
    %v1741 = vrot.slane %v816, 1
    %v1742 = vrot.slane %v817, 1
    %v1743 = vsel %vm221, %v1741, %v1742
    %v1744 = vrot.slane %v818, 1
    %v1745 = vsel %vm221, %v1742, %v1744
    %v1749 = vadd.f32 %v697, %v1743
    %v1750 = vadd.f32 %v698, %v1745
    %v1751 = vadd.f32 %v699, %v1744
    %v1754 = vrot.slane %v993, 2
    %v1755 = vrot.slane %v994, 2
    %v1756 = vsel %vm342, %v1754, %v1755
    %v1760 = vadd.f32 %v935, %v1754
    %v1761 = vadd.f32 %v936, %v1756
    %v1762 = vadd.f32 %v937, %v1755
    %v1766 = vrot.slane %v1233, 1
    %v1767 = vrot.slane %v1234, 1
    %v1768 = vsel %vm221, %v1766, %v1767
    %v1769 = vrot.slane %v1235, 1
    %v1770 = vsel %vm221, %v1767, %v1769
    %v1774 = vadd.f32 %v1114, %v1768
    %v1775 = vadd.f32 %v1115, %v1770
    %v1776 = vadd.f32 %v1116, %v1769
    %v1780 = vrot.slane %v1471, 1
    %v1781 = vrot.slane %v1472, 1
    %v1782 = vsel %vm221, %v1780, %v1781
    %v1783 = vrot.slane %v1473, 1
    %v1784 = vsel %vm221, %v1781, %v1783
    %v1788 = vadd.f32 %v1352, %v1782
    %v1789 = vadd.f32 %v1353, %v1784
    %v1790 = vadd.f32 %v1354, %v1783
    %v1794 = vrot.slane %v1709, 1
    %v1795 = vrot.slane %v1710, 1
    %v1796 = vsel %vm221, %v1794, %v1795
    %v1797 = vrot.slane %v1711, 1
    %v1798 = vsel %vm221, %v1795, %v1797
    %v1802 = vadd.f32 %v1590, %v1796
    %v1803 = vadd.f32 %v1591, %v1798
    %v1804 = vadd.f32 %v1592, %v1797
    %v1808 = vrot.slane %v1735, 2
    %v1809 = vrot.slane %v1736, 2
    %v1810 = vsel %vm342, %v1808, %v1809
    %v1811 = vrot.slane %v1737, 2
    %v1812 = vsel %vm342, %v1809, %v1811
    %v1815 = vadd.f32 %v1722, %v1810
    %v1816 = vadd.f32 %v1723, %v1812
    %v1820 = vrot.slane %v1760, 2
    %v1821 = vrot.slane %v1761, 2
    %v1822 = vsel %vm342, %v1820, %v1821
    %v1823 = vrot.slane %v1762, 2
    %v1824 = vsel %vm342, %v1821, %v1823
    %v1828 = vadd.f32 %v1749, %v1822
    %v1829 = vadd.f32 %v1750, %v1824
    %v1830 = vadd.f32 %v1751, %v1823
    %v1834 = vrot.slane %v1788, 2
    %v1835 = vrot.slane %v1789, 2
    %v1836 = vsel %vm342, %v1834, %v1835
    %v1837 = vrot.slane %v1790, 2
    %v1838 = vsel %vm342, %v1835, %v1837
    %v1842 = vadd.f32 %v1774, %v1836
    %v1843 = vadd.f32 %v1775, %v1838
    %v1844 = vadd.f32 %v1776, %v1837
    %v1848 = vrot.slane %v1828, 4
    %v1849 = vrot.slane %v1829, 4
    %v1850 = vsel %vm584, %v1848, %v1849
    %v1851 = vrot.slane %v1830, 4
    %v1852 = vsel %vm584, %v1849, %v1851
    %v1855 = vadd.f32 %v1815, %v1850
    %v1856 = vadd.f32 %v1816, %v1852
    %v1860 = vrot.slane %v1802, 4
    %v1861 = vrot.slane %v1803, 4
    %v1862 = vsel %vm584, %v1860, %v1861
    %v1863 = vrot.slane %v1804, 4
    %v1864 = vsel %vm584, %v1861, %v1863
    %v1868 = vadd.f32 %v1842, %v1862
    %v1869 = vadd.f32 %v1843, %v1864
    %v1870 = vadd.f32 %v1844, %v1863
    %v1874 = vrot.slane %v1868, 1
    %v1875 = vrot.slane %v1869, 1
    %v1876 = vsel %vm221, %v1874, %v1875
    %v1877 = vrot.slane %v1870, 1
    %v1878 = vsel %vm221, %v1875, %v1877
    %v1881 = vadd.f32 %v1855, %v1876
    %v1882 = vadd.f32 %v1856, %v1878
    %v1883 = vstv %s126
    %v1884 = vadd.f32 %v1881, %v1883
    %v1885 = vadd.f32 %v1882, %v1883
    %v1886 = vxor.u32 %v1884, 2147483648
    %v1887 = vxor.u32 %v1885, 2147483648
    %v1888 = vmul.f32 %v1886, 1.442695
    %v1889 = vpow.pop %v1888
    %v1890 = vmul.f32 %v1887, 1.442695
    %v1891 = vpow.pop %v1890
    %v1892 = vadd.f32 %v1889, 1.0
    %v1893 = vadd.f32 %v1891, 1.0
    %v1894 = vrcp.pop %v1892
    %v1895 = vmul.f32 1.0, %v1894
    %v1896 = vrcp.pop %v1893
    %v1897 = vmul.f32 1.0, %v1896
    %1898 = vst [vmem:[%s3] sm:$0xff] %v1895
    %1899 = vst [vmem:[%s3 + $0x8] sm:$0xff] %v1897
    // Predicated region
    $region18: #{spatial_attention.1} parent=1 // pred_check
      _
    $region19: #{spatial_attention.1} parent=1 // pred_check_branch
      %1901 = sbr.rel (0) target = $region21
    $region20: #{spatial_attention.1} parent=1 // pred_region
      _
    $region21: #{spatial_attention.1} parent=1 // pred_fallthru
      _
    // Predicated region
    $region22: #{spatial_attention.1} parent=1 // pred_check
      _
    $region23: #{spatial_attention.1} parent=1 // pred_check_branch
      %1903 = sbr.rel (0) target = $region25
    $region24: #{spatial_attention.1} parent=1 // pred_region
      _
    $region25: #{spatial_attention.1} parent=1 // pred_fallthru
      _
    %1904 = vsyncpa [#allocation4], 1

</llo_original>
